<compile_context>
chip_gen: v5e
topology: v5e:2x2
jax: 0.10.0
libtpu: 0.0.40
codegen_flags: <defaults>
</compile_context>

<pallas_src>
import math

import jax
import jax.numpy as jnp
from jax import lax
from jax.experimental import pallas as pl
from jax.experimental.pallas import tpu as pltpu


# ----------------------------------------------------------------------------
# Helpers
# ----------------------------------------------------------------------------
def _sigmoid(x):
    # sigmoid(x) = 0.5 * tanh(0.5*x) + 0.5 : one EUP tanh instead of exp+divide.
    return 0.5 * jnp.tanh(0.5 * x) + 0.5


def _next_pow2(n):
    return 1 if n <= 1 else 1 << (n - 1).bit_length()


def _pick_time_chunk(T, B, H, budget_bytes=16 * 1024 * 1024, max_chunk=64):
    """Largest power-of-two Tc whose per-grid-step VMEM fits a v5e-safe budget.

    Per step (per core): double-buffered bf16 g (Tc,B,4H) and out (Tc,B,H)
    blocks, single-buffered bf16 W_hh (H,4H), and two f32 (B,H) scratch bufs.
    """
    H4 = 4 * H
    fixed = H * H4 * 2 + 2 * B * H * 4
    per_step = 2 * (B * H4 * 2) + 2 * (B * H * 2)
    tc = max_chunk
    while tc > 1 and fixed + tc * per_step > budget_bytes:
        tc //= 2
    # Don't make the chunk (and hence the padded T) far larger than T itself.
    return max(1, min(tc, _next_pow2(T)))


def _pick_row_tile(N, target=512):
    """Row tile for the final linear; always divides N (N is a multiple of 8)."""
    return math.gcd(N, target)


# ----------------------------------------------------------------------------
# Fused bidirectional LSTM layer (Pallas)
# ----------------------------------------------------------------------------
def bilstm_layer(gates, w_hh, Tc, T_real):
    """Run one fused bidirectional LSTM layer recurrence.

    gates: (2, T_pad, B, 4H) bf16  precomputed x@W_ih^T + b_ih + b_hh per
                                   direction, natural time order.
    w_hh:  (2, H, 4H) bf16         stacked hidden-to-hidden weights (fwd, bwd).
    Tc:    time-chunk size (divides T_pad).
    T_real: un-padded sequence length (steps >= T_real are masked out).

    Returns (2, T_pad, B, H) bf16 hidden states in natural time order.
    """
    _, T_pad, B, H4 = gates.shape
    H = H4 // 4
    nTc = T_pad // Tc
    needs_mask = T_pad != T_real

    def kernel(g_ref, w_hh_ref, out_ref, h_scr, c_scr):
        d = pl.program_id(0)    # 0 = forward, 1 = backward (parallel axis)
        ci = pl.program_id(1)   # time-chunk index (sequential axis)

        @pl.when(ci == 0)
        def _():
            h_scr[...] = jnp.zeros_like(h_scr)
            c_scr[...] = jnp.zeros_like(c_scr)

        # Per-gate weight slices, hoisted out of the recurrence (bf16).
        w_i = w_hh_ref[:, 0 * H:1 * H]
        w_f = w_hh_ref[:, 1 * H:2 * H]
        w_g = w_hh_ref[:, 2 * H:3 * H]
        w_o = w_hh_ref[:, 3 * H:4 * H]

        # Global time offset of this (direction, chunk): the index_map hands
        # the backward direction its chunks in reversed order.
        chunk_base = (ci + d * (nTc - 1 - 2 * ci)) * Tc

        def step(j, carry):
            h_prev, c_prev = carry
            # forward: t = j ; backward: t = Tc - 1 - j (data is in natural order)
            t = j + d * (Tc - 1 - 2 * j)
            h_b16 = h_prev.astype(jnp.bfloat16)
            g_t = g_ref[t]                                    # (B, 4H) bf16
            # Per-gate (B,H) dots; nonlinearity applied as soon as available.
            i_g = _sigmoid(g_t[:, 0 * H:1 * H].astype(jnp.float32) +
                           jnp.dot(h_b16, w_i, preferred_element_type=jnp.float32))
            f_g = _sigmoid(g_t[:, 1 * H:2 * H].astype(jnp.float32) +
                           jnp.dot(h_b16, w_f, preferred_element_type=jnp.float32))
            g_g = jnp.tanh(g_t[:, 2 * H:3 * H].astype(jnp.float32) +
                           jnp.dot(h_b16, w_g, preferred_element_type=jnp.float32))
            c_new = f_g * c_prev + i_g * g_g
            # o-gate last so tanh(c_new) overlaps its matmul.
            o_g = _sigmoid(g_t[:, 3 * H:4 * H].astype(jnp.float32) +
                           jnp.dot(h_b16, w_o, preferred_element_type=jnp.float32))
            h_new = o_g * jnp.tanh(c_new)
            if needs_mask:
                # Freeze the state on padded steps (t >= T_real).  For the
                # backward direction these come FIRST, so freezing them is
                # exactly "start fresh at t = T_real - 1".
                valid = (chunk_base + t) < T_real
                h_new = jnp.where(valid, h_new, h_prev)
                c_new = jnp.where(valid, c_new, c_prev)
            out_ref[t] = h_new.astype(jnp.bfloat16)
            return h_new, c_new

        h_fin, c_fin = lax.fori_loop(0, Tc, step, (h_scr[...], c_scr[...]),
                                     unroll=min(Tc, 8))
        h_scr[...] = h_fin
        c_scr[...] = c_fin

    def io_map(d, ci):
        # forward uses chunk ci ; backward uses chunk nTc - 1 - ci.
        return (d, ci + d * (nTc - 1 - 2 * ci), 0, 0)

    return pl.pallas_call(
        kernel,
        out_shape=jax.ShapeDtypeStruct((2, T_pad, B, H), jnp.bfloat16),
        grid_spec=pltpu.PrefetchScalarGridSpec(
            num_scalar_prefetch=0,
            grid=(2, nTc),
            in_specs=[
                pl.BlockSpec((None, Tc, B, H4), io_map),
                # Constant within a direction -> single-buffer (saves H*4H*2 B).
                pl.BlockSpec((None, H, H4), lambda d, ci: (d, 0, 0),
                             pipeline_mode=pl.Buffered(1)),
            ],
            out_specs=pl.BlockSpec((None, Tc, B, H), io_map),
            scratch_shapes=[
                pltpu.VMEM((B, H), jnp.float32),   # h carry
                pltpu.VMEM((B, H), jnp.float32),   # c carry
            ],
        ),
        # Note: on v7x one would use (CORE_PARALLEL, ARBITRARY) to pin the two
        # directions onto the two TensorCores; on v5e/v6e the two directions
        # could be fused into one pass.  Kept generation-neutral here.
        compiler_params=pltpu.CompilerParams(
            dimension_semantics=("parallel", "arbitrary"),
            vmem_limit_bytes=32 * 1024 * 1024),
    )(gates, w_hh)


# ----------------------------------------------------------------------------
# Final Linear(2H -> F) + sigmoid (Pallas), lane-dense padded F
# ----------------------------------------------------------------------------
def linear_sigmoid(h_f, h_b, wf, wb, bias):
    """o = sigmoid(hf @ Wf + hb @ Wb + b), tiled over rows.

    h_f/h_b: (N, H) bf16, wf/wb: (H, Fp) bf16, bias: (1, Fp) f32 -> (N, Fp) f32.
    Wf/Wb are the two halves of the (2H, Fp) Linear weight, so the bidirectional
    activations never need to be concatenated.
    """
    N, H = h_f.shape
    Fp = wf.shape[1]
    R = _pick_row_tile(N)
    nR = N // R

    def kernel(hf_ref, hb_ref, wf_ref, wb_ref, b_ref, o_ref):
        y = (jnp.dot(hf_ref[...], wf_ref[...], preferred_element_type=jnp.float32)
             + jnp.dot(hb_ref[...], wb_ref[...], preferred_element_type=jnp.float32)
             + b_ref[...])
        o_ref[...] = _sigmoid(y)

    return pl.pallas_call(
        kernel,
        out_shape=jax.ShapeDtypeStruct((N, Fp), jnp.float32),
        grid=(nR,),
        in_specs=[
            pl.BlockSpec((R, H), lambda r: (r, 0)),
            pl.BlockSpec((R, H), lambda r: (r, 0)),
            pl.BlockSpec((H, Fp), lambda r: (0, 0), pipeline_mode=pl.Buffered(1)),
            pl.BlockSpec((H, Fp), lambda r: (0, 0), pipeline_mode=pl.Buffered(1)),
            pl.BlockSpec((1, Fp), lambda r: (0, 0), pipeline_mode=pl.Buffered(1)),
        ],
        out_specs=pl.BlockSpec((R, Fp), lambda r: (r, 0)),
        compiler_params=pltpu.CompilerParams(
            dimension_semantics=("parallel",),
            vmem_limit_bytes=32 * 1024 * 1024),
    )(h_f, h_b, wf, wb, bias)


# ----------------------------------------------------------------------------
# Full forward pass
# ----------------------------------------------------------------------------
@jax.jit
def blstm2_forward(x, params):
    """x: (B, f_size, T) float32 -> mask: (B, f_size, T) float32."""
    B, F, T = x.shape
    H = params["w_hh_l0"].shape[1]

    # Pad batch (sublane occupancy) and time (chunking) with zeros.
    B_pad = -(-B // 8) * 8
    Tc = _pick_time_chunk(T, B_pad, H)
    T_pad = -(-T // Tc) * Tc
    x_p = jnp.pad(x, ((0, B_pad - B), (0, 0), (0, T_pad - T)))
    x_b16 = x_p.astype(jnp.bfloat16)

    # ---- Layer 0: both directions' input projections in ONE bf16 einsum,
    #      writing (2, T, B, 4H) directly (fuses the (B,F,T)->(T,B,F) permute).
    g0 = (jnp.einsum("bft,dfg->dtbg", x_b16,
                     params["w_ih_l0"].astype(jnp.bfloat16),
                     preferred_element_type=jnp.float32)
          + params["b_l0"][:, None, None, :]).astype(jnp.bfloat16)
    h0 = bilstm_layer(g0, params["w_hh_l0"].astype(jnp.bfloat16), Tc, T)

    # ---- Layer 1: projection consumes the stacked (fwd, bwd) halves directly
    #      (split-weight contraction -> no concatenate of h0), one einsum.
    w1 = params["w_ih_l1"].reshape(2, 2, H, 4 * H).astype(jnp.bfloat16)
    g1 = (jnp.einsum("dtbh,edhg->etbg", h0, w1,
                     preferred_element_type=jnp.float32)
          + params["b_l1"][:, None, None, :]).astype(jnp.bfloat16)
    h1 = bilstm_layer(g1, params["w_hh_l1"].astype(jnp.bfloat16), Tc, T)

    # ---- Final Linear(2H -> F) + sigmoid; pad F to a lane-dense multiple of 128.
    F_pad = -(-F // 128) * 128
    w_out = params["w_out_t"]
    wf = jnp.pad(w_out[:H], ((0, 0), (0, F_pad - F))).astype(jnp.bfloat16)
    wb = jnp.pad(w_out[H:], ((0, 0), (0, F_pad - F))).astype(jnp.bfloat16)
    bo = jnp.pad(params["b_out"], (0, F_pad - F)).reshape(1, F_pad)

    h1_f = h1[0].reshape(T_pad * B_pad, H)   # free reshape, time-major rows
    h1_b = h1[1].reshape(T_pad * B_pad, H)
    mask = linear_sigmoid(h1_f, h1_b, wf, wb, bo)
    mask = mask.reshape(T_pad, B_pad, F_pad)
    mask = jnp.transpose(mask, (1, 2, 0))    # (B_pad, F_pad, T_pad)
    return mask[:B, :F, :T]


# ----------------------------------------------------------------------------
# Pure-JAX f32 reference for correctness checking
# ----------------------------------------------------------------------------
def _lstm_ref_dir(x_tbd, w_ih_t, w_hh_t, b, reverse):
    T, B, _ = x_tbd.shape
    H = w_hh_t.shape[0]
    xs = jnp.flip(x_tbd, 0) if reverse else x_tbd

    def step(carry, x_t):
        h, c = carry
        gates = x_t @ w_ih_t + h @ w_hh_t + b
        i = jax.nn.sigmoid(gates[:, :H])
        f = jax.nn.sigmoid(gates[:, H:2 * H])
        g = jnp.tanh(gates[:, 2 * H:3 * H])
        o = jax.nn.sigmoid(gates[:, 3 * H:])
        c = f * c + i * g
        h = o * jnp.tanh(c)
        return (h, c), h

    init = (jnp.zeros((B, H), jnp.float32), jnp.zeros((B, H), jnp.float32))
    _, hs = lax.scan(step, init, xs)
    return jnp.flip(hs, 0) if reverse else hs


def blstm2_reference(x, params):
    x_tbd = jnp.transpose(x, (2, 0, 1))
    h0f = _lstm_ref_dir(x_tbd, params["w_ih_l0"][0], params["w_hh_l0"][0],
                        params["b_l0"][0], False)
    h0b = _lstm_ref_dir(x_tbd, params["w_ih_l0"][1], params["w_hh_l0"][1],
                        params["b_l0"][1], True)
    y0 = jnp.concatenate([h0f, h0b], axis=-1)
    h1f = _lstm_ref_dir(y0, params["w_ih_l1"][0], params["w_hh_l1"][0],
                        params["b_l1"][0], False)
    h1b = _lstm_ref_dir(y0, params["w_ih_l1"][1], params["w_hh_l1"][1],
                        params["b_l1"][1], True)
    y1 = jnp.concatenate([h1f, h1b], axis=-1)
    out = jax.nn.sigmoid(y1 @ params["w_out_t"] + params["b_out"])  # (T,B,F)
    return jnp.transpose(out, (1, 2, 0))


# ----------------------------------------------------------------------------
# Deterministic parameter construction (PyTorch-equivalent shapes, stored
# stacked + pre-transposed for the kernels: W^T layout, gate order (i,f,g,o)).
# ----------------------------------------------------------------------------
def init_params(key, f_size, hidden_size):
    H = hidden_size
    H4 = 4 * H
    stdv = 1.0 / math.sqrt(H)

    def u(k, shape, bound):
        return jax.random.uniform(k, shape, jnp.float32, -bound, bound)

    keys = jax.random.split(key, 10)
    p = {}
    p["w_ih_l0"] = u(keys[0], (2, f_size, H4), stdv)    # (dir, in, 4H)
    p["w_ih_l1"] = u(keys[1], (2, 2 * H, H4), stdv)     # (dir, 2H, 4H)
    p["w_hh_l0"] = u(keys[2], (2, H, H4), stdv)         # (dir, H, 4H)
    p["w_hh_l1"] = u(keys[3], (2, H, H4), stdv)
    # Combined biases b_ih + b_hh per direction.
    p["b_l0"] = u(keys[4], (2, H4), stdv) + u(keys[5], (2, H4), stdv)
    p["b_l1"] = u(keys[6], (2, H4), stdv) + u(keys[7], (2, H4), stdv)
    lin_stdv = 1.0 / math.sqrt(2 * H)
    p["w_out_t"] = u(keys[8], (2 * H, f_size), lin_stdv)  # (2H, F)
    p["b_out"] = u(keys[9], (f_size,), lin_stdv)
    return p


if __name__ == "__main__":
    cfg = {"f_size": 16, "hidden_size": 32}
    key = jax.random.PRNGKey(0)
    k_params, k_x1, k_x2 = jax.random.split(key, 3)
    params = init_params(k_params, cfg["f_size"], cfg["hidden_size"])

    # Two cases: one that needs no padding (B=2,T=8) and one that exercises the
    # batch/time padding + masked-tail path (B=3, T=11).
    for (B, T), kx in (((2, 8), k_x1), ((3, 11), k_x2)):
        x = jax.random.normal(kx, (B, cfg["f_size"], T), dtype=jnp.float32)
        mask = jax.block_until_ready(blstm2_forward(x, params))

        assert mask.shape == (B, cfg["f_size"], T), mask.shape
        assert mask.dtype == jnp.float32
        assert bool(jnp.all(jnp.isfinite(mask)))
        assert bool(jnp.all((mask >= 0.0) & (mask <= 1.0)))  # sigmoid range

        ref = blstm2_reference(x, params)
        max_err = float(jnp.max(jnp.abs(mask - ref)))
        assert max_err < 4e-2, f"max abs err vs reference: {max_err} (B={B}, T={T})"

    print("KERNEL_OK")
</pallas_src>

<mosaic_0001>
module attributes {stable_mosaic.version = 11 : i64} {
  func.func @kernel(%arg0: i32, %arg1: i32, %arg2: memref<1x8x8x128xbf16, #tpu.memory_space<vmem>>, %arg3: memref<1x32x128xbf16, #tpu.memory_space<vmem>>, %arg4: memref<1x8x8x32xbf16, #tpu.memory_space<vmem>>, %arg5: memref<8x32xf32, #tpu.memory_space<vmem>>, %arg6: memref<8x32xf32, #tpu.memory_space<vmem>>) attributes {dimension_semantics = [#tpu.dimension_semantics<parallel>, #tpu.dimension_semantics<arbitrary>], iteration_bounds = array<i64: 2, 1>, scalar_prefetch = 0 : i64, scratch_operands = 2 : i64, tpu.core_type = #tpu.core_type<tc>, window_params = [{transform_indices = @transform_0, window_bounds = array<i64: 1, 8, 8, 128>}, {pipeline_mode = #tpu.pipeline_mode<synchronous>, transform_indices = @transform_1, window_bounds = array<i64: 1, 32, 128>}, {transform_indices = @transform_2, window_bounds = array<i64: 1, 8, 8, 32>}]} {
    %c0_i32 = arith.constant 0 : i32
    %0 = arith.cmpi eq, %arg1, %c0_i32 : i32
    %1 = arith.extui %0 : i1 to i32
    %c0_i32_0 = arith.constant 0 : i32
    %2 = arith.cmpi ne, %1, %c0_i32_0 : i32
    scf.if %2 {
      %cst_185 = arith.constant 0.000000e+00 : f32
      %463 = vector.broadcast %cst_185 : f32 to vector<8x32xf32>
      %c0_186 = arith.constant 0 : index
      %c0_187 = arith.constant 0 : index
      %464 = vector.load %arg5[%c0_186, %c0_187] : memref<8x32xf32, #tpu.memory_space<vmem>>, vector<8x32xf32>
      tpu.vector_store %arg5[%c0_186, %c0_187], %463 {strides = array<i32>} : memref<8x32xf32, #tpu.memory_space<vmem>>, vector<8x32xf32>,
      %cst_188 = arith.constant 0.000000e+00 : f32
      %465 = vector.broadcast %cst_188 : f32 to vector<8x32xf32>
      %c0_189 = arith.constant 0 : index
      %c0_190 = arith.constant 0 : index
      %466 = vector.load %arg6[%c0_189, %c0_190] : memref<8x32xf32, #tpu.memory_space<vmem>>, vector<8x32xf32>
      tpu.vector_store %arg6[%c0_189, %c0_190], %465 {strides = array<i32>} : memref<8x32xf32, #tpu.memory_space<vmem>>, vector<8x32xf32>,
    } else {
    }
    %c0 = arith.constant 0 : index
    %c0_1 = arith.constant 0 : index
    %c0_2 = arith.constant 0 : index
    %3 = vector.load %arg3[%c0, %c0_1, %c0_2] : memref<1x32x128xbf16, #tpu.memory_space<vmem>>, vector<1x32x32xbf16>
    %4 = vector.shape_cast %3 : vector<1x32x32xbf16> to vector<32x32xbf16>
    %c0_3 = arith.constant 0 : index
    %c0_4 = arith.constant 0 : index
    %c32 = arith.constant 32 : index
    %5 = vector.load %arg3[%c0_3, %c0_4, %c32] : memref<1x32x128xbf16, #tpu.memory_space<vmem>>, vector<1x32x32xbf16>
    %6 = vector.shape_cast %5 : vector<1x32x32xbf16> to vector<32x32xbf16>
    %c0_5 = arith.constant 0 : index
    %c0_6 = arith.constant 0 : index
    %c64 = arith.constant 64 : index
    %7 = vector.load %arg3[%c0_5, %c0_6, %c64] : memref<1x32x128xbf16, #tpu.memory_space<vmem>>, vector<1x32x32xbf16>
    %8 = vector.shape_cast %7 : vector<1x32x32xbf16> to vector<32x32xbf16>
    %c0_7 = arith.constant 0 : index
    %c0_8 = arith.constant 0 : index
    %c96 = arith.constant 96 : index
    %9 = vector.load %arg3[%c0_7, %c0_8, %c96] : memref<1x32x128xbf16, #tpu.memory_space<vmem>>, vector<1x32x32xbf16>
    %10 = vector.shape_cast %9 : vector<1x32x32xbf16> to vector<32x32xbf16>
    %c0_9 = arith.constant 0 : index
    %c0_10 = arith.constant 0 : index
    %11 = vector.load %arg5[%c0_9, %c0_10] : memref<8x32xf32, #tpu.memory_space<vmem>>, vector<8x32xf32>
    %c0_11 = arith.constant 0 : index
    %c0_12 = arith.constant 0 : index
    %12 = vector.load %arg6[%c0_11, %c0_12] : memref<8x32xf32, #tpu.memory_space<vmem>>, vector<8x32xf32>
    %c0_i32_13 = arith.constant 0 : i32
    %c2_i32 = arith.constant 2 : i32
    %13 = arith.muli %c2_i32, %c0_i32_13 : i32
    %c7_i32 = arith.constant 7 : i32
    %14 = arith.subi %c7_i32, %13 : i32
    %15 = arith.muli %arg0, %14 : i32
    %16 = arith.addi %c0_i32_13, %15 : i32
    %17 = arith.truncf %11 : vector<8x32xf32> to vector<8x32xbf16>
    %c0_14 = arith.constant 0 : index
    %18 = arith.index_cast %16 : i32 to index
    %c0_15 = arith.constant 0 : index
    %c0_16 = arith.constant 0 : index
    %19 = vector.load %arg2[%c0_14, %18, %c0_15, %c0_16] : memref<1x8x8x128xbf16, #tpu.memory_space<vmem>>, vector<1x1x8x128xbf16>
    %20 = vector.shape_cast %19 : vector<1x1x8x128xbf16> to vector<8x128xbf16>
    %21 = vector.extract_strided_slice %20 {offsets = [0, 0], sizes = [8, 32], strides = [1, 1]} : vector<8x128xbf16> to vector<8x32xbf16>
    %22 = arith.extf %21 : vector<8x32xbf16> to vector<8x32xf32>
    %cst = arith.constant dense<0.000000e+00> : vector<8x32xf32>
    %23 = tpu.matmul %17, %4, %cst {dimension_numbers = #tpu.dot_dimension_numbers<[1], [0], [0], [1], [0, 0, 1, 1], [], []>} : vector<8x32xbf16>, vector<32x32xbf16>, vector<8x32xf32> -> vector<8x32xf32>
    %24 = arith.addf %22, %23 : vector<8x32xf32>
    %cst_17 = arith.constant 5.000000e-01 : f32
    %25 = vector.broadcast %cst_17 : f32 to vector<8x32xf32>
    %26 = arith.mulf %25, %24 : vector<8x32xf32>
    %27 = math.tanh %26 : vector<8x32xf32>
    %cst_18 = arith.constant 5.000000e-01 : f32
    %28 = vector.broadcast %cst_18 : f32 to vector<8x32xf32>
    %29 = arith.mulf %28, %27 : vector<8x32xf32>
    %cst_19 = arith.constant 5.000000e-01 : f32
    %30 = vector.broadcast %cst_19 : f32 to vector<8x32xf32>
    %31 = arith.addf %29, %30 : vector<8x32xf32>
    %32 = vector.extract_strided_slice %20 {offsets = [0, 32], sizes = [8, 32], strides = [1, 1]} : vector<8x128xbf16> to vector<8x32xbf16>
    %33 = arith.extf %32 : vector<8x32xbf16> to vector<8x32xf32>
    %cst_20 = arith.constant dense<0.000000e+00> : vector<8x32xf32>
    %34 = tpu.matmul %17, %6, %cst_20 {dimension_numbers = #tpu.dot_dimension_numbers<[1], [0], [0], [1], [0, 0, 1, 1], [], []>} : vector<8x32xbf16>, vector<32x32xbf16>, vector<8x32xf32> -> vector<8x32xf32>
    %35 = arith.addf %33, %34 : vector<8x32xf32>
    %cst_21 = arith.constant 5.000000e-01 : f32
    %36 = vector.broadcast %cst_21 : f32 to vector<8x32xf32>
    %37 = arith.mulf %36, %35 : vector<8x32xf32>
    %38 = math.tanh %37 : vector<8x32xf32>
    %cst_22 = arith.constant 5.000000e-01 : f32
    %39 = vector.broadcast %cst_22 : f32 to vector<8x32xf32>
    %40 = arith.mulf %39, %38 : vector<8x32xf32>
    %cst_23 = arith.constant 5.000000e-01 : f32
    %41 = vector.broadcast %cst_23 : f32 to vector<8x32xf32>
    %42 = arith.addf %40, %41 : vector<8x32xf32>
    %43 = vector.extract_strided_slice %20 {offsets = [0, 64], sizes = [8, 32], strides = [1, 1]} : vector<8x128xbf16> to vector<8x32xbf16>
    %44 = arith.extf %43 : vector<8x32xbf16> to vector<8x32xf32>
    %cst_24 = arith.constant dense<0.000000e+00> : vector<8x32xf32>
    %45 = tpu.matmul %17, %8, %cst_24 {dimension_numbers = #tpu.dot_dimension_numbers<[1], [0], [0], [1], [0, 0, 1, 1], [], []>} : vector<8x32xbf16>, vector<32x32xbf16>, vector<8x32xf32> -> vector<8x32xf32>
    %46 = arith.addf %44, %45 : vector<8x32xf32>
    %47 = math.tanh %46 : vector<8x32xf32>
    %48 = arith.mulf %42, %12 : vector<8x32xf32>
    %49 = arith.mulf %31, %47 : vector<8x32xf32>
    %50 = arith.addf %48, %49 : vector<8x32xf32>
    %51 = vector.extract_strided_slice %20 {offsets = [0, 96], sizes = [8, 32], strides = [1, 1]} : vector<8x128xbf16> to vector<8x32xbf16>
    %52 = arith.extf %51 : vector<8x32xbf16> to vector<8x32xf32>
    %cst_25 = arith.constant dense<0.000000e+00> : vector<8x32xf32>
    %53 = tpu.matmul %17, %10, %cst_25 {dimension_numbers = #tpu.dot_dimension_numbers<[1], [0], [0], [1], [0, 0, 1, 1], [], []>} : vector<8x32xbf16>, vector<32x32xbf16>, vector<8x32xf32> -> vector<8x32xf32>
    %54 = arith.addf %52, %53 : vector<8x32xf32>
    %cst_26 = arith.constant 5.000000e-01 : f32
    %55 = vector.broadcast %cst_26 : f32 to vector<8x32xf32>
    %56 = arith.mulf %55, %54 : vector<8x32xf32>
    %57 = math.tanh %56 : vector<8x32xf32>
    %cst_27 = arith.constant 5.000000e-01 : f32
    %58 = vector.broadcast %cst_27 : f32 to vector<8x32xf32>
    %59 = arith.mulf %58, %57 : vector<8x32xf32>
    %cst_28 = arith.constant 5.000000e-01 : f32
    %60 = vector.broadcast %cst_28 : f32 to vector<8x32xf32>
    %61 = arith.addf %59, %60 : vector<8x32xf32>
    %62 = math.tanh %50 : vector<8x32xf32>
    %63 = arith.mulf %61, %62 : vector<8x32xf32>
    %64 = arith.truncf %63 : vector<8x32xf32> to vector<8x32xbf16>
    %c0_29 = arith.constant 0 : index
    %65 = arith.index_cast %16 : i32 to index
    %c0_30 = arith.constant 0 : index
    %c0_31 = arith.constant 0 : index
    %66 = vector.load %arg4[%c0_29, %65, %c0_30, %c0_31] : memref<1x8x8x32xbf16, #tpu.memory_space<vmem>>, vector<1x1x8x32xbf16>
    %67 = vector.shape_cast %66 : vector<1x1x8x32xbf16> to vector<8x32xbf16>
    %68 = vector.shape_cast %64 : vector<8x32xbf16> to vector<1x1x8x32xbf16>
    tpu.vector_store %arg4[%c0_29, %65, %c0_30, %c0_31], %68 {strides = array<i32>} : memref<1x8x8x32xbf16, #tpu.memory_space<vmem>>, vector<1x1x8x32xbf16>,
    %c1_i32 = arith.constant 1 : i32
    %c2_i32_32 = arith.constant 2 : i32
    %69 = arith.muli %c2_i32_32, %c1_i32 : i32
    %c7_i32_33 = arith.constant 7 : i32
    %70 = arith.subi %c7_i32_33, %69 : i32
    %71 = arith.muli %arg0, %70 : i32
    %72 = arith.addi %c1_i32, %71 : i32
    %73 = arith.truncf %63 : vector<8x32xf32> to vector<8x32xbf16>
    %c0_34 = arith.constant 0 : index
    %74 = arith.index_cast %72 : i32 to index
    %c0_35 = arith.constant 0 : index
    %c0_36 = arith.constant 0 : index
    %75 = vector.load %arg2[%c0_34, %74, %c0_35, %c0_36] : memref<1x8x8x128xbf16, #tpu.memory_space<vmem>>, vector<1x1x8x128xbf16>
    %76 = vector.shape_cast %75 : vector<1x1x8x128xbf16> to vector<8x128xbf16>
    %77 = vector.extract_strided_slice %76 {offsets = [0, 0], sizes = [8, 32], strides = [1, 1]} : vector<8x128xbf16> to vector<8x32xbf16>
    %78 = arith.extf %77 : vector<8x32xbf16> to vector<8x32xf32>
    %cst_37 = arith.constant dense<0.000000e+00> : vector<8x32xf32>
    %79 = tpu.matmul %73, %4, %cst_37 {dimension_numbers = #tpu.dot_dimension_numbers<[1], [0], [0], [1], [0, 0, 1, 1], [], []>} : vector<8x32xbf16>, vector<32x32xbf16>, vector<8x32xf32> -> vector<8x32xf32>
    %80 = arith.addf %78, %79 : vector<8x32xf32>
    %cst_38 = arith.constant 5.000000e-01 : f32
    %81 = vector.broadcast %cst_38 : f32 to vector<8x32xf32>
    %82 = arith.mulf %81, %80 : vector<8x32xf32>
    %83 = math.tanh %82 : vector<8x32xf32>
    %cst_39 = arith.constant 5.000000e-01 : f32
    %84 = vector.broadcast %cst_39 : f32 to vector<8x32xf32>
    %85 = arith.mulf %84, %83 : vector<8x32xf32>
    %cst_40 = arith.constant 5.000000e-01 : f32
    %86 = vector.broadcast %cst_40 : f32 to vector<8x32xf32>
    %87 = arith.addf %85, %86 : vector<8x32xf32>
    %88 = vector.extract_strided_slice %76 {offsets = [0, 32], sizes = [8, 32], strides = [1, 1]} : vector<8x128xbf16> to vector<8x32xbf16>
    %89 = arith.extf %88 : vector<8x32xbf16> to vector<8x32xf32>
    %cst_41 = arith.constant dense<0.000000e+00> : vector<8x32xf32>
    %90 = tpu.matmul %73, %6, %cst_41 {dimension_numbers = #tpu.dot_dimension_numbers<[1], [0], [0], [1], [0, 0, 1, 1], [], []>} : vector<8x32xbf16>, vector<32x32xbf16>, vector<8x32xf32> -> vector<8x32xf32>
    %91 = arith.addf %89, %90 : vector<8x32xf32>
    %cst_42 = arith.constant 5.000000e-01 : f32
    %92 = vector.broadcast %cst_42 : f32 to vector<8x32xf32>
    %93 = arith.mulf %92, %91 : vector<8x32xf32>
    %94 = math.tanh %93 : vector<8x32xf32>
    %cst_43 = arith.constant 5.000000e-01 : f32
    %95 = vector.broadcast %cst_43 : f32 to vector<8x32xf32>
    %96 = arith.mulf %95, %94 : vector<8x32xf32>
    %cst_44 = arith.constant 5.000000e-01 : f32
    %97 = vector.broadcast %cst_44 : f32 to vector<8x32xf32>
    %98 = arith.addf %96, %97 : vector<8x32xf32>
    %99 = vector.extract_strided_slice %76 {offsets = [0, 64], sizes = [8, 32], strides = [1, 1]} : vector<8x128xbf16> to vector<8x32xbf16>
    %100 = arith.extf %99 : vector<8x32xbf16> to vector<8x32xf32>
    %cst_45 = arith.constant dense<0.000000e+00> : vector<8x32xf32>
    %101 = tpu.matmul %73, %8, %cst_45 {dimension_numbers = #tpu.dot_dimension_numbers<[1], [0], [0], [1], [0, 0, 1, 1], [], []>} : vector<8x32xbf16>, vector<32x32xbf16>, vector<8x32xf32> -> vector<8x32xf32>
    %102 = arith.addf %100, %101 : vector<8x32xf32>
    %103 = math.tanh %102 : vector<8x32xf32>
    %104 = arith.mulf %98, %50 : vector<8x32xf32>
    %105 = arith.mulf %87, %103 : vector<8x32xf32>
    %106 = arith.addf %104, %105 : vector<8x32xf32>
    %107 = vector.extract_strided_slice %76 {offsets = [0, 96], sizes = [8, 32], strides = [1, 1]} : vector<8x128xbf16> to vector<8x32xbf16>
    %108 = arith.extf %107 : vector<8x32xbf16> to vector<8x32xf32>
    %cst_46 = arith.constant dense<0.000000e+00> : vector<8x32xf32>
    %109 = tpu.matmul %73, %10, %cst_46 {dimension_numbers = #tpu.dot_dimension_numbers<[1], [0], [0], [1], [0, 0, 1, 1], [], []>} : vector<8x32xbf16>, vector<32x32xbf16>, vector<8x32xf32> -> vector<8x32xf32>
    %110 = arith.addf %108, %109 : vector<8x32xf32>
    %cst_47 = arith.constant 5.000000e-01 : f32
    %111 = vector.broadcast %cst_47 : f32 to vector<8x32xf32>
    %112 = arith.mulf %111, %110 : vector<8x32xf32>
    %113 = math.tanh %112 : vector<8x32xf32>
    %cst_48 = arith.constant 5.000000e-01 : f32
    %114 = vector.broadcast %cst_48 : f32 to vector<8x32xf32>
    %115 = arith.mulf %114, %113 : vector<8x32xf32>
    %cst_49 = arith.constant 5.000000e-01 : f32
    %116 = vector.broadcast %cst_49 : f32 to vector<8x32xf32>
    %117 = arith.addf %115, %116 : vector<8x32xf32>
    %118 = math.tanh %106 : vector<8x32xf32>
    %119 = arith.mulf %117, %118 : vector<8x32xf32>
    %120 = arith.truncf %119 : vector<8x32xf32> to vector<8x32xbf16>
    %c0_50 = arith.constant 0 : index
    %121 = arith.index_cast %72 : i32 to index
    %c0_51 = arith.constant 0 : index
    %c0_52 = arith.constant 0 : index
    %122 = vector.load %arg4[%c0_50, %121, %c0_51, %c0_52] : memref<1x8x8x32xbf16, #tpu.memory_space<vmem>>, vector<1x1x8x32xbf16>
    %123 = vector.shape_cast %122 : vector<1x1x8x32xbf16> to vector<8x32xbf16>
    %124 = vector.shape_cast %120 : vector<8x32xbf16> to vector<1x1x8x32xbf16>
    tpu.vector_store %arg4[%c0_50, %121, %c0_51, %c0_52], %124 {strides = array<i32>} : memref<1x8x8x32xbf16, #tpu.memory_space<vmem>>, vector<1x1x8x32xbf16>,
    %c2_i32_53 = arith.constant 2 : i32
    %c2_i32_54 = arith.constant 2 : i32
    %125 = arith.muli %c2_i32_54, %c2_i32_53 : i32
    %c7_i32_55 = arith.constant 7 : i32
    %126 = arith.subi %c7_i32_55, %125 : i32
    %127 = arith.muli %arg0, %126 : i32
    %128 = arith.addi %c2_i32_53, %127 : i32
    %129 = arith.truncf %119 : vector<8x32xf32> to vector<8x32xbf16>
    %c0_56 = arith.constant 0 : index
    %130 = arith.index_cast %128 : i32 to index
    %c0_57 = arith.constant 0 : index
    %c0_58 = arith.constant 0 : index
    %131 = vector.load %arg2[%c0_56, %130, %c0_57, %c0_58] : memref<1x8x8x128xbf16, #tpu.memory_space<vmem>>, vector<1x1x8x128xbf16>
    %132 = vector.shape_cast %131 : vector<1x1x8x128xbf16> to vector<8x128xbf16>
    %133 = vector.extract_strided_slice %132 {offsets = [0, 0], sizes = [8, 32], strides = [1, 1]} : vector<8x128xbf16> to vector<8x32xbf16>
    %134 = arith.extf %133 : vector<8x32xbf16> to vector<8x32xf32>
    %cst_59 = arith.constant dense<0.000000e+00> : vector<8x32xf32>
    %135 = tpu.matmul %129, %4, %cst_59 {dimension_numbers = #tpu.dot_dimension_numbers<[1], [0], [0], [1], [0, 0, 1, 1], [], []>} : vector<8x32xbf16>, vector<32x32xbf16>, vector<8x32xf32> -> vector<8x32xf32>
    %136 = arith.addf %134, %135 : vector<8x32xf32>
    %cst_60 = arith.constant 5.000000e-01 : f32
    %137 = vector.broadcast %cst_60 : f32 to vector<8x32xf32>
    %138 = arith.mulf %137, %136 : vector<8x32xf32>
    %139 = math.tanh %138 : vector<8x32xf32>
    %cst_61 = arith.constant 5.000000e-01 : f32
    %140 = vector.broadcast %cst_61 : f32 to vector<8x32xf32>
    %141 = arith.mulf %140, %139 : vector<8x32xf32>
    %cst_62 = arith.constant 5.000000e-01 : f32
    %142 = vector.broadcast %cst_62 : f32 to vector<8x32xf32>
    %143 = arith.addf %141, %142 : vector<8x32xf32>
    %144 = vector.extract_strided_slice %132 {offsets = [0, 32], sizes = [8, 32], strides = [1, 1]} : vector<8x128xbf16> to vector<8x32xbf16>
    %145 = arith.extf %144 : vector<8x32xbf16> to vector<8x32xf32>
    %cst_63 = arith.constant dense<0.000000e+00> : vector<8x32xf32>
    %146 = tpu.matmul %129, %6, %cst_63 {dimension_numbers = #tpu.dot_dimension_numbers<[1], [0], [0], [1], [0, 0, 1, 1], [], []>} : vector<8x32xbf16>, vector<32x32xbf16>, vector<8x32xf32> -> vector<8x32xf32>
    %147 = arith.addf %145, %146 : vector<8x32xf32>
    %cst_64 = arith.constant 5.000000e-01 : f32
    %148 = vector.broadcast %cst_64 : f32 to vector<8x32xf32>
    %149 = arith.mulf %148, %147 : vector<8x32xf32>
    %150 = math.tanh %149 : vector<8x32xf32>
    %cst_65 = arith.constant 5.000000e-01 : f32
    %151 = vector.broadcast %cst_65 : f32 to vector<8x32xf32>
    %152 = arith.mulf %151, %150 : vector<8x32xf32>
    %cst_66 = arith.constant 5.000000e-01 : f32
    %153 = vector.broadcast %cst_66 : f32 to vector<8x32xf32>
    %154 = arith.addf %152, %153 : vector<8x32xf32>
    %155 = vector.extract_strided_slice %132 {offsets = [0, 64], sizes = [8, 32], strides = [1, 1]} : vector<8x128xbf16> to vector<8x32xbf16>
    %156 = arith.extf %155 : vector<8x32xbf16> to vector<8x32xf32>
    %cst_67 = arith.constant dense<0.000000e+00> : vector<8x32xf32>
    %157 = tpu.matmul %129, %8, %cst_67 {dimension_numbers = #tpu.dot_dimension_numbers<[1], [0], [0], [1], [0, 0, 1, 1], [], []>} : vector<8x32xbf16>, vector<32x32xbf16>, vector<8x32xf32> -> vector<8x32xf32>
    %158 = arith.addf %156, %157 : vector<8x32xf32>
    %159 = math.tanh %158 : vector<8x32xf32>
    %160 = arith.mulf %154, %106 : vector<8x32xf32>
    %161 = arith.mulf %143, %159 : vector<8x32xf32>
    %162 = arith.addf %160, %161 : vector<8x32xf32>
    %163 = vector.extract_strided_slice %132 {offsets = [0, 96], sizes = [8, 32], strides = [1, 1]} : vector<8x128xbf16> to vector<8x32xbf16>
    %164 = arith.extf %163 : vector<8x32xbf16> to vector<8x32xf32>
    %cst_68 = arith.constant dense<0.000000e+00> : vector<8x32xf32>
    %165 = tpu.matmul %129, %10, %cst_68 {dimension_numbers = #tpu.dot_dimension_numbers<[1], [0], [0], [1], [0, 0, 1, 1], [], []>} : vector<8x32xbf16>, vector<32x32xbf16>, vector<8x32xf32> -> vector<8x32xf32>
    %166 = arith.addf %164, %165 : vector<8x32xf32>
    %cst_69 = arith.constant 5.000000e-01 : f32
    %167 = vector.broadcast %cst_69 : f32 to vector<8x32xf32>
    %168 = arith.mulf %167, %166 : vector<8x32xf32>
    %169 = math.tanh %168 : vector<8x32xf32>
    %cst_70 = arith.constant 5.000000e-01 : f32
    %170 = vector.broadcast %cst_70 : f32 to vector<8x32xf32>
    %171 = arith.mulf %170, %169 : vector<8x32xf32>
    %cst_71 = arith.constant 5.000000e-01 : f32
    %172 = vector.broadcast %cst_71 : f32 to vector<8x32xf32>
    %173 = arith.addf %171, %172 : vector<8x32xf32>
    %174 = math.tanh %162 : vector<8x32xf32>
    %175 = arith.mulf %173, %174 : vector<8x32xf32>
    %176 = arith.truncf %175 : vector<8x32xf32> to vector<8x32xbf16>
    %c0_72 = arith.constant 0 : index
    %177 = arith.index_cast %128 : i32 to index
    %c0_73 = arith.constant 0 : index
    %c0_74 = arith.constant 0 : index
    %178 = vector.load %arg4[%c0_72, %177, %c0_73, %c0_74] : memref<1x8x8x32xbf16, #tpu.memory_space<vmem>>, vector<1x1x8x32xbf16>
    %179 = vector.shape_cast %178 : vector<1x1x8x32xbf16> to vector<8x32xbf16>
    %180 = vector.shape_cast %176 : vector<8x32xbf16> to vector<1x1x8x32xbf16>
    tpu.vector_store %arg4[%c0_72, %177, %c0_73, %c0_74], %180 {strides = array<i32>} : memref<1x8x8x32xbf16, #tpu.memory_space<vmem>>, vector<1x1x8x32xbf16>,
    %c3_i32 = arith.constant 3 : i32
    %c2_i32_75 = arith.constant 2 : i32
    %181 = arith.muli %c2_i32_75, %c3_i32 : i32
    %c7_i32_76 = arith.constant 7 : i32
    %182 = arith.subi %c7_i32_76, %181 : i32
    %183 = arith.muli %arg0, %182 : i32
    %184 = arith.addi %c3_i32, %183 : i32
    %185 = arith.truncf %175 : vector<8x32xf32> to vector<8x32xbf16>
    %c0_77 = arith.constant 0 : index
    %186 = arith.index_cast %184 : i32 to index
    %c0_78 = arith.constant 0 : index
    %c0_79 = arith.constant 0 : index
    %187 = vector.load %arg2[%c0_77, %186, %c0_78, %c0_79] : memref<1x8x8x128xbf16, #tpu.memory_space<vmem>>, vector<1x1x8x128xbf16>
    %188 = vector.shape_cast %187 : vector<1x1x8x128xbf16> to vector<8x128xbf16>
    %189 = vector.extract_strided_slice %188 {offsets = [0, 0], sizes = [8, 32], strides = [1, 1]} : vector<8x128xbf16> to vector<8x32xbf16>
    %190 = arith.extf %189 : vector<8x32xbf16> to vector<8x32xf32>
    %cst_80 = arith.constant dense<0.000000e+00> : vector<8x32xf32>
    %191 = tpu.matmul %185, %4, %cst_80 {dimension_numbers = #tpu.dot_dimension_numbers<[1], [0], [0], [1], [0, 0, 1, 1], [], []>} : vector<8x32xbf16>, vector<32x32xbf16>, vector<8x32xf32> -> vector<8x32xf32>
    %192 = arith.addf %190, %191 : vector<8x32xf32>
    %cst_81 = arith.constant 5.000000e-01 : f32
    %193 = vector.broadcast %cst_81 : f32 to vector<8x32xf32>
    %194 = arith.mulf %193, %192 : vector<8x32xf32>
    %195 = math.tanh %194 : vector<8x32xf32>
    %cst_82 = arith.constant 5.000000e-01 : f32
    %196 = vector.broadcast %cst_82 : f32 to vector<8x32xf32>
    %197 = arith.mulf %196, %195 : vector<8x32xf32>
    %cst_83 = arith.constant 5.000000e-01 : f32
    %198 = vector.broadcast %cst_83 : f32 to vector<8x32xf32>
    %199 = arith.addf %197, %198 : vector<8x32xf32>
    %200 = vector.extract_strided_slice %188 {offsets = [0, 32], sizes = [8, 32], strides = [1, 1]} : vector<8x128xbf16> to vector<8x32xbf16>
    %201 = arith.extf %200 : vector<8x32xbf16> to vector<8x32xf32>
    %cst_84 = arith.constant dense<0.000000e+00> : vector<8x32xf32>
    %202 = tpu.matmul %185, %6, %cst_84 {dimension_numbers = #tpu.dot_dimension_numbers<[1], [0], [0], [1], [0, 0, 1, 1], [], []>} : vector<8x32xbf16>, vector<32x32xbf16>, vector<8x32xf32> -> vector<8x32xf32>
    %203 = arith.addf %201, %202 : vector<8x32xf32>
    %cst_85 = arith.constant 5.000000e-01 : f32
    %204 = vector.broadcast %cst_85 : f32 to vector<8x32xf32>
    %205 = arith.mulf %204, %203 : vector<8x32xf32>
    %206 = math.tanh %205 : vector<8x32xf32>
    %cst_86 = arith.constant 5.000000e-01 : f32
    %207 = vector.broadcast %cst_86 : f32 to vector<8x32xf32>
    %208 = arith.mulf %207, %206 : vector<8x32xf32>
    %cst_87 = arith.constant 5.000000e-01 : f32
    %209 = vector.broadcast %cst_87 : f32 to vector<8x32xf32>
    %210 = arith.addf %208, %209 : vector<8x32xf32>
    %211 = vector.extract_strided_slice %188 {offsets = [0, 64], sizes = [8, 32], strides = [1, 1]} : vector<8x128xbf16> to vector<8x32xbf16>
    %212 = arith.extf %211 : vector<8x32xbf16> to vector<8x32xf32>
    %cst_88 = arith.constant dense<0.000000e+00> : vector<8x32xf32>
    %213 = tpu.matmul %185, %8, %cst_88 {dimension_numbers = #tpu.dot_dimension_numbers<[1], [0], [0], [1], [0, 0, 1, 1], [], []>} : vector<8x32xbf16>, vector<32x32xbf16>, vector<8x32xf32> -> vector<8x32xf32>
    %214 = arith.addf %212, %213 : vector<8x32xf32>
    %215 = math.tanh %214 : vector<8x32xf32>
    %216 = arith.mulf %210, %162 : vector<8x32xf32>
    %217 = arith.mulf %199, %215 : vector<8x32xf32>
    %218 = arith.addf %216, %217 : vector<8x32xf32>
    %219 = vector.extract_strided_slice %188 {offsets = [0, 96], sizes = [8, 32], strides = [1, 1]} : vector<8x128xbf16> to vector<8x32xbf16>
    %220 = arith.extf %219 : vector<8x32xbf16> to vector<8x32xf32>
    %cst_89 = arith.constant dense<0.000000e+00> : vector<8x32xf32>
    %221 = tpu.matmul %185, %10, %cst_89 {dimension_numbers = #tpu.dot_dimension_numbers<[1], [0], [0], [1], [0, 0, 1, 1], [], []>} : vector<8x32xbf16>, vector<32x32xbf16>, vector<8x32xf32> -> vector<8x32xf32>
    %222 = arith.addf %220, %221 : vector<8x32xf32>
    %cst_90 = arith.constant 5.000000e-01 : f32
    %223 = vector.broadcast %cst_90 : f32 to vector<8x32xf32>
    %224 = arith.mulf %223, %222 : vector<8x32xf32>
    %225 = math.tanh %224 : vector<8x32xf32>
    %cst_91 = arith.constant 5.000000e-01 : f32
    %226 = vector.broadcast %cst_91 : f32 to vector<8x32xf32>
    %227 = arith.mulf %226, %225 : vector<8x32xf32>
    %cst_92 = arith.constant 5.000000e-01 : f32
    %228 = vector.broadcast %cst_92 : f32 to vector<8x32xf32>
    %229 = arith.addf %227, %228 : vector<8x32xf32>
    %230 = math.tanh %218 : vector<8x32xf32>
    %231 = arith.mulf %229, %230 : vector<8x32xf32>
    %232 = arith.truncf %231 : vector<8x32xf32> to vector<8x32xbf16>
    %c0_93 = arith.constant 0 : index
    %233 = arith.index_cast %184 : i32 to index
    %c0_94 = arith.constant 0 : index
    %c0_95 = arith.constant 0 : index
    %234 = vector.load %arg4[%c0_93, %233, %c0_94, %c0_95] : memref<1x8x8x32xbf16, #tpu.memory_space<vmem>>, vector<1x1x8x32xbf16>
    %235 = vector.shape_cast %234 : vector<1x1x8x32xbf16> to vector<8x32xbf16>
    %236 = vector.shape_cast %232 : vector<8x32xbf16> to vector<1x1x8x32xbf16>
    tpu.vector_store %arg4[%c0_93, %233, %c0_94, %c0_95], %236 {strides = array<i32>} : memref<1x8x8x32xbf16, #tpu.memory_space<vmem>>, vector<1x1x8x32xbf16>,
    %c4_i32 = arith.constant 4 : i32
    %c2_i32_96 = arith.constant 2 : i32
    %237 = arith.muli %c2_i32_96, %c4_i32 : i32
    %c7_i32_97 = arith.constant 7 : i32
    %238 = arith.subi %c7_i32_97, %237 : i32
    %239 = arith.muli %arg0, %238 : i32
    %240 = arith.addi %c4_i32, %239 : i32
    %241 = arith.truncf %231 : vector<8x32xf32> to vector<8x32xbf16>
    %c0_98 = arith.constant 0 : index
    %242 = arith.index_cast %240 : i32 to index
    %c0_99 = arith.constant 0 : index
    %c0_100 = arith.constant 0 : index
    %243 = vector.load %arg2[%c0_98, %242, %c0_99, %c0_100] : memref<1x8x8x128xbf16, #tpu.memory_space<vmem>>, vector<1x1x8x128xbf16>
    %244 = vector.shape_cast %243 : vector<1x1x8x128xbf16> to vector<8x128xbf16>
    %245 = vector.extract_strided_slice %244 {offsets = [0, 0], sizes = [8, 32], strides = [1, 1]} : vector<8x128xbf16> to vector<8x32xbf16>
    %246 = arith.extf %245 : vector<8x32xbf16> to vector<8x32xf32>
    %cst_101 = arith.constant dense<0.000000e+00> : vector<8x32xf32>
    %247 = tpu.matmul %241, %4, %cst_101 {dimension_numbers = #tpu.dot_dimension_numbers<[1], [0], [0], [1], [0, 0, 1, 1], [], []>} : vector<8x32xbf16>, vector<32x32xbf16>, vector<8x32xf32> -> vector<8x32xf32>
    %248 = arith.addf %246, %247 : vector<8x32xf32>
    %cst_102 = arith.constant 5.000000e-01 : f32
    %249 = vector.broadcast %cst_102 : f32 to vector<8x32xf32>
    %250 = arith.mulf %249, %248 : vector<8x32xf32>
    %251 = math.tanh %250 : vector<8x32xf32>
    %cst_103 = arith.constant 5.000000e-01 : f32
    %252 = vector.broadcast %cst_103 : f32 to vector<8x32xf32>
    %253 = arith.mulf %252, %251 : vector<8x32xf32>
    %cst_104 = arith.constant 5.000000e-01 : f32
    %254 = vector.broadcast %cst_104 : f32 to vector<8x32xf32>
    %255 = arith.addf %253, %254 : vector<8x32xf32>
    %256 = vector.extract_strided_slice %244 {offsets = [0, 32], sizes = [8, 32], strides = [1, 1]} : vector<8x128xbf16> to vector<8x32xbf16>
    %257 = arith.extf %256 : vector<8x32xbf16> to vector<8x32xf32>
    %cst_105 = arith.constant dense<0.000000e+00> : vector<8x32xf32>
    %258 = tpu.matmul %241, %6, %cst_105 {dimension_numbers = #tpu.dot_dimension_numbers<[1], [0], [0], [1], [0, 0, 1, 1], [], []>} : vector<8x32xbf16>, vector<32x32xbf16>, vector<8x32xf32> -> vector<8x32xf32>
    %259 = arith.addf %257, %258 : vector<8x32xf32>
    %cst_106 = arith.constant 5.000000e-01 : f32
    %260 = vector.broadcast %cst_106 : f32 to vector<8x32xf32>
    %261 = arith.mulf %260, %259 : vector<8x32xf32>
    %262 = math.tanh %261 : vector<8x32xf32>
    %cst_107 = arith.constant 5.000000e-01 : f32
    %263 = vector.broadcast %cst_107 : f32 to vector<8x32xf32>
    %264 = arith.mulf %263, %262 : vector<8x32xf32>
    %cst_108 = arith.constant 5.000000e-01 : f32
    %265 = vector.broadcast %cst_108 : f32 to vector<8x32xf32>
    %266 = arith.addf %264, %265 : vector<8x32xf32>
    %267 = vector.extract_strided_slice %244 {offsets = [0, 64], sizes = [8, 32], strides = [1, 1]} : vector<8x128xbf16> to vector<8x32xbf16>
    %268 = arith.extf %267 : vector<8x32xbf16> to vector<8x32xf32>
    %cst_109 = arith.constant dense<0.000000e+00> : vector<8x32xf32>
    %269 = tpu.matmul %241, %8, %cst_109 {dimension_numbers = #tpu.dot_dimension_numbers<[1], [0], [0], [1], [0, 0, 1, 1], [], []>} : vector<8x32xbf16>, vector<32x32xbf16>, vector<8x32xf32> -> vector<8x32xf32>
    %270 = arith.addf %268, %269 : vector<8x32xf32>
    %271 = math.tanh %270 : vector<8x32xf32>
    %272 = arith.mulf %266, %218 : vector<8x32xf32>
    %273 = arith.mulf %255, %271 : vector<8x32xf32>
    %274 = arith.addf %272, %273 : vector<8x32xf32>
    %275 = vector.extract_strided_slice %244 {offsets = [0, 96], sizes = [8, 32], strides = [1, 1]} : vector<8x128xbf16> to vector<8x32xbf16>
    %276 = arith.extf %275 : vector<8x32xbf16> to vector<8x32xf32>
    %cst_110 = arith.constant dense<0.000000e+00> : vector<8x32xf32>
    %277 = tpu.matmul %241, %10, %cst_110 {dimension_numbers = #tpu.dot_dimension_numbers<[1], [0], [0], [1], [0, 0, 1, 1], [], []>} : vector<8x32xbf16>, vector<32x32xbf16>, vector<8x32xf32> -> vector<8x32xf32>
    %278 = arith.addf %276, %277 : vector<8x32xf32>
    %cst_111 = arith.constant 5.000000e-01 : f32
    %279 = vector.broadcast %cst_111 : f32 to vector<8x32xf32>
    %280 = arith.mulf %279, %278 : vector<8x32xf32>
    %281 = math.tanh %280 : vector<8x32xf32>
    %cst_112 = arith.constant 5.000000e-01 : f32
    %282 = vector.broadcast %cst_112 : f32 to vector<8x32xf32>
    %283 = arith.mulf %282, %281 : vector<8x32xf32>
    %cst_113 = arith.constant 5.000000e-01 : f32
    %284 = vector.broadcast %cst_113 : f32 to vector<8x32xf32>
    %285 = arith.addf %283, %284 : vector<8x32xf32>
    %286 = math.tanh %274 : vector<8x32xf32>
    %287 = arith.mulf %285, %286 : vector<8x32xf32>
    %288 = arith.truncf %287 : vector<8x32xf32> to vector<8x32xbf16>
    %c0_114 = arith.constant 0 : index
    %289 = arith.index_cast %240 : i32 to index
    %c0_115 = arith.constant 0 : index
    %c0_116 = arith.constant 0 : index
    %290 = vector.load %arg4[%c0_114, %289, %c0_115, %c0_116] : memref<1x8x8x32xbf16, #tpu.memory_space<vmem>>, vector<1x1x8x32xbf16>
    %291 = vector.shape_cast %290 : vector<1x1x8x32xbf16> to vector<8x32xbf16>
    %292 = vector.shape_cast %288 : vector<8x32xbf16> to vector<1x1x8x32xbf16>
    tpu.vector_store %arg4[%c0_114, %289, %c0_115, %c0_116], %292 {strides = array<i32>} : memref<1x8x8x32xbf16, #tpu.memory_space<vmem>>, vector<1x1x8x32xbf16>,
    %c5_i32 = arith.constant 5 : i32
    %c2_i32_117 = arith.constant 2 : i32
    %293 = arith.muli %c2_i32_117, %c5_i32 : i32
    %c7_i32_118 = arith.constant 7 : i32
    %294 = arith.subi %c7_i32_118, %293 : i32
    %295 = arith.muli %arg0, %294 : i32
    %296 = arith.addi %c5_i32, %295 : i32
    %297 = arith.truncf %287 : vector<8x32xf32> to vector<8x32xbf16>
    %c0_119 = arith.constant 0 : index
    %298 = arith.index_cast %296 : i32 to index
    %c0_120 = arith.constant 0 : index
    %c0_121 = arith.constant 0 : index
    %299 = vector.load %arg2[%c0_119, %298, %c0_120, %c0_121] : memref<1x8x8x128xbf16, #tpu.memory_space<vmem>>, vector<1x1x8x128xbf16>
    %300 = vector.shape_cast %299 : vector<1x1x8x128xbf16> to vector<8x128xbf16>
    %301 = vector.extract_strided_slice %300 {offsets = [0, 0], sizes = [8, 32], strides = [1, 1]} : vector<8x128xbf16> to vector<8x32xbf16>
    %302 = arith.extf %301 : vector<8x32xbf16> to vector<8x32xf32>
    %cst_122 = arith.constant dense<0.000000e+00> : vector<8x32xf32>
    %303 = tpu.matmul %297, %4, %cst_122 {dimension_numbers = #tpu.dot_dimension_numbers<[1], [0], [0], [1], [0, 0, 1, 1], [], []>} : vector<8x32xbf16>, vector<32x32xbf16>, vector<8x32xf32> -> vector<8x32xf32>
    %304 = arith.addf %302, %303 : vector<8x32xf32>
    %cst_123 = arith.constant 5.000000e-01 : f32
    %305 = vector.broadcast %cst_123 : f32 to vector<8x32xf32>
    %306 = arith.mulf %305, %304 : vector<8x32xf32>
    %307 = math.tanh %306 : vector<8x32xf32>
    %cst_124 = arith.constant 5.000000e-01 : f32
    %308 = vector.broadcast %cst_124 : f32 to vector<8x32xf32>
    %309 = arith.mulf %308, %307 : vector<8x32xf32>
    %cst_125 = arith.constant 5.000000e-01 : f32
    %310 = vector.broadcast %cst_125 : f32 to vector<8x32xf32>
    %311 = arith.addf %309, %310 : vector<8x32xf32>
    %312 = vector.extract_strided_slice %300 {offsets = [0, 32], sizes = [8, 32], strides = [1, 1]} : vector<8x128xbf16> to vector<8x32xbf16>
    %313 = arith.extf %312 : vector<8x32xbf16> to vector<8x32xf32>
    %cst_126 = arith.constant dense<0.000000e+00> : vector<8x32xf32>
    %314 = tpu.matmul %297, %6, %cst_126 {dimension_numbers = #tpu.dot_dimension_numbers<[1], [0], [0], [1], [0, 0, 1, 1], [], []>} : vector<8x32xbf16>, vector<32x32xbf16>, vector<8x32xf32> -> vector<8x32xf32>
    %315 = arith.addf %313, %314 : vector<8x32xf32>
    %cst_127 = arith.constant 5.000000e-01 : f32
    %316 = vector.broadcast %cst_127 : f32 to vector<8x32xf32>
    %317 = arith.mulf %316, %315 : vector<8x32xf32>
    %318 = math.tanh %317 : vector<8x32xf32>
    %cst_128 = arith.constant 5.000000e-01 : f32
    %319 = vector.broadcast %cst_128 : f32 to vector<8x32xf32>
    %320 = arith.mulf %319, %318 : vector<8x32xf32>
    %cst_129 = arith.constant 5.000000e-01 : f32
    %321 = vector.broadcast %cst_129 : f32 to vector<8x32xf32>
    %322 = arith.addf %320, %321 : vector<8x32xf32>
    %323 = vector.extract_strided_slice %300 {offsets = [0, 64], sizes = [8, 32], strides = [1, 1]} : vector<8x128xbf16> to vector<8x32xbf16>
    %324 = arith.extf %323 : vector<8x32xbf16> to vector<8x32xf32>
    %cst_130 = arith.constant dense<0.000000e+00> : vector<8x32xf32>
    %325 = tpu.matmul %297, %8, %cst_130 {dimension_numbers = #tpu.dot_dimension_numbers<[1], [0], [0], [1], [0, 0, 1, 1], [], []>} : vector<8x32xbf16>, vector<32x32xbf16>, vector<8x32xf32> -> vector<8x32xf32>
    %326 = arith.addf %324, %325 : vector<8x32xf32>
    %327 = math.tanh %326 : vector<8x32xf32>
    %328 = arith.mulf %322, %274 : vector<8x32xf32>
    %329 = arith.mulf %311, %327 : vector<8x32xf32>
    %330 = arith.addf %328, %329 : vector<8x32xf32>
    %331 = vector.extract_strided_slice %300 {offsets = [0, 96], sizes = [8, 32], strides = [1, 1]} : vector<8x128xbf16> to vector<8x32xbf16>
    %332 = arith.extf %331 : vector<8x32xbf16> to vector<8x32xf32>
    %cst_131 = arith.constant dense<0.000000e+00> : vector<8x32xf32>
    %333 = tpu.matmul %297, %10, %cst_131 {dimension_numbers = #tpu.dot_dimension_numbers<[1], [0], [0], [1], [0, 0, 1, 1], [], []>} : vector<8x32xbf16>, vector<32x32xbf16>, vector<8x32xf32> -> vector<8x32xf32>
    %334 = arith.addf %332, %333 : vector<8x32xf32>
    %cst_132 = arith.constant 5.000000e-01 : f32
    %335 = vector.broadcast %cst_132 : f32 to vector<8x32xf32>
    %336 = arith.mulf %335, %334 : vector<8x32xf32>
    %337 = math.tanh %336 : vector<8x32xf32>
    %cst_133 = arith.constant 5.000000e-01 : f32
    %338 = vector.broadcast %cst_133 : f32 to vector<8x32xf32>
    %339 = arith.mulf %338, %337 : vector<8x32xf32>
    %cst_134 = arith.constant 5.000000e-01 : f32
    %340 = vector.broadcast %cst_134 : f32 to vector<8x32xf32>
    %341 = arith.addf %339, %340 : vector<8x32xf32>
    %342 = math.tanh %330 : vector<8x32xf32>
    %343 = arith.mulf %341, %342 : vector<8x32xf32>
    %344 = arith.truncf %343 : vector<8x32xf32> to vector<8x32xbf16>
    %c0_135 = arith.constant 0 : index
    %345 = arith.index_cast %296 : i32 to index
    %c0_136 = arith.constant 0 : index
    %c0_137 = arith.constant 0 : index
    %346 = vector.load %arg4[%c0_135, %345, %c0_136, %c0_137] : memref<1x8x8x32xbf16, #tpu.memory_space<vmem>>, vector<1x1x8x32xbf16>
    %347 = vector.shape_cast %346 : vector<1x1x8x32xbf16> to vector<8x32xbf16>
    %348 = vector.shape_cast %344 : vector<8x32xbf16> to vector<1x1x8x32xbf16>
    tpu.vector_store %arg4[%c0_135, %345, %c0_136, %c0_137], %348 {strides = array<i32>} : memref<1x8x8x32xbf16, #tpu.memory_space<vmem>>, vector<1x1x8x32xbf16>,
    %c6_i32 = arith.constant 6 : i32
    %c2_i32_138 = arith.constant 2 : i32
    %349 = arith.muli %c2_i32_138, %c6_i32 : i32
    %c7_i32_139 = arith.constant 7 : i32
    %350 = arith.subi %c7_i32_139, %349 : i32
    %351 = arith.muli %arg0, %350 : i32
    %352 = arith.addi %c6_i32, %351 : i32
    %353 = arith.truncf %343 : vector<8x32xf32> to vector<8x32xbf16>
    %c0_140 = arith.constant 0 : index
    %354 = arith.index_cast %352 : i32 to index
    %c0_141 = arith.constant 0 : index
    %c0_142 = arith.constant 0 : index
    %355 = vector.load %arg2[%c0_140, %354, %c0_141, %c0_142] : memref<1x8x8x128xbf16, #tpu.memory_space<vmem>>, vector<1x1x8x128xbf16>
    %356 = vector.shape_cast %355 : vector<1x1x8x128xbf16> to vector<8x128xbf16>
    %357 = vector.extract_strided_slice %356 {offsets = [0, 0], sizes = [8, 32], strides = [1, 1]} : vector<8x128xbf16> to vector<8x32xbf16>
    %358 = arith.extf %357 : vector<8x32xbf16> to vector<8x32xf32>
    %cst_143 = arith.constant dense<0.000000e+00> : vector<8x32xf32>
    %359 = tpu.matmul %353, %4, %cst_143 {dimension_numbers = #tpu.dot_dimension_numbers<[1], [0], [0], [1], [0, 0, 1, 1], [], []>} : vector<8x32xbf16>, vector<32x32xbf16>, vector<8x32xf32> -> vector<8x32xf32>
    %360 = arith.addf %358, %359 : vector<8x32xf32>
    %cst_144 = arith.constant 5.000000e-01 : f32
    %361 = vector.broadcast %cst_144 : f32 to vector<8x32xf32>
    %362 = arith.mulf %361, %360 : vector<8x32xf32>
    %363 = math.tanh %362 : vector<8x32xf32>
    %cst_145 = arith.constant 5.000000e-01 : f32
    %364 = vector.broadcast %cst_145 : f32 to vector<8x32xf32>
    %365 = arith.mulf %364, %363 : vector<8x32xf32>
    %cst_146 = arith.constant 5.000000e-01 : f32
    %366 = vector.broadcast %cst_146 : f32 to vector<8x32xf32>
    %367 = arith.addf %365, %366 : vector<8x32xf32>
    %368 = vector.extract_strided_slice %356 {offsets = [0, 32], sizes = [8, 32], strides = [1, 1]} : vector<8x128xbf16> to vector<8x32xbf16>
    %369 = arith.extf %368 : vector<8x32xbf16> to vector<8x32xf32>
    %cst_147 = arith.constant dense<0.000000e+00> : vector<8x32xf32>
    %370 = tpu.matmul %353, %6, %cst_147 {dimension_numbers = #tpu.dot_dimension_numbers<[1], [0], [0], [1], [0, 0, 1, 1], [], []>} : vector<8x32xbf16>, vector<32x32xbf16>, vector<8x32xf32> -> vector<8x32xf32>
    %371 = arith.addf %369, %370 : vector<8x32xf32>
    %cst_148 = arith.constant 5.000000e-01 : f32
    %372 = vector.broadcast %cst_148 : f32 to vector<8x32xf32>
    %373 = arith.mulf %372, %371 : vector<8x32xf32>
    %374 = math.tanh %373 : vector<8x32xf32>
    %cst_149 = arith.constant 5.000000e-01 : f32
    %375 = vector.broadcast %cst_149 : f32 to vector<8x32xf32>
    %376 = arith.mulf %375, %374 : vector<8x32xf32>
    %cst_150 = arith.constant 5.000000e-01 : f32
    %377 = vector.broadcast %cst_150 : f32 to vector<8x32xf32>
    %378 = arith.addf %376, %377 : vector<8x32xf32>
    %379 = vector.extract_strided_slice %356 {offsets = [0, 64], sizes = [8, 32], strides = [1, 1]} : vector<8x128xbf16> to vector<8x32xbf16>
    %380 = arith.extf %379 : vector<8x32xbf16> to vector<8x32xf32>
    %cst_151 = arith.constant dense<0.000000e+00> : vector<8x32xf32>
    %381 = tpu.matmul %353, %8, %cst_151 {dimension_numbers = #tpu.dot_dimension_numbers<[1], [0], [0], [1], [0, 0, 1, 1], [], []>} : vector<8x32xbf16>, vector<32x32xbf16>, vector<8x32xf32> -> vector<8x32xf32>
    %382 = arith.addf %380, %381 : vector<8x32xf32>
    %383 = math.tanh %382 : vector<8x32xf32>
    %384 = arith.mulf %378, %330 : vector<8x32xf32>
    %385 = arith.mulf %367, %383 : vector<8x32xf32>
    %386 = arith.addf %384, %385 : vector<8x32xf32>
    %387 = vector.extract_strided_slice %356 {offsets = [0, 96], sizes = [8, 32], strides = [1, 1]} : vector<8x128xbf16> to vector<8x32xbf16>
    %388 = arith.extf %387 : vector<8x32xbf16> to vector<8x32xf32>
    %cst_152 = arith.constant dense<0.000000e+00> : vector<8x32xf32>
    %389 = tpu.matmul %353, %10, %cst_152 {dimension_numbers = #tpu.dot_dimension_numbers<[1], [0], [0], [1], [0, 0, 1, 1], [], []>} : vector<8x32xbf16>, vector<32x32xbf16>, vector<8x32xf32> -> vector<8x32xf32>
    %390 = arith.addf %388, %389 : vector<8x32xf32>
    %cst_153 = arith.constant 5.000000e-01 : f32
    %391 = vector.broadcast %cst_153 : f32 to vector<8x32xf32>
    %392 = arith.mulf %391, %390 : vector<8x32xf32>
    %393 = math.tanh %392 : vector<8x32xf32>
    %cst_154 = arith.constant 5.000000e-01 : f32
    %394 = vector.broadcast %cst_154 : f32 to vector<8x32xf32>
    %395 = arith.mulf %394, %393 : vector<8x32xf32>
    %cst_155 = arith.constant 5.000000e-01 : f32
    %396 = vector.broadcast %cst_155 : f32 to vector<8x32xf32>
    %397 = arith.addf %395, %396 : vector<8x32xf32>
    %398 = math.tanh %386 : vector<8x32xf32>
    %399 = arith.mulf %397, %398 : vector<8x32xf32>
    %400 = arith.truncf %399 : vector<8x32xf32> to vector<8x32xbf16>
    %c0_156 = arith.constant 0 : index
    %401 = arith.index_cast %352 : i32 to index
    %c0_157 = arith.constant 0 : index
    %c0_158 = arith.constant 0 : index
    %402 = vector.load %arg4[%c0_156, %401, %c0_157, %c0_158] : memref<1x8x8x32xbf16, #tpu.memory_space<vmem>>, vector<1x1x8x32xbf16>
    %403 = vector.shape_cast %402 : vector<1x1x8x32xbf16> to vector<8x32xbf16>
    %404 = vector.shape_cast %400 : vector<8x32xbf16> to vector<1x1x8x32xbf16>
    tpu.vector_store %arg4[%c0_156, %401, %c0_157, %c0_158], %404 {strides = array<i32>} : memref<1x8x8x32xbf16, #tpu.memory_space<vmem>>, vector<1x1x8x32xbf16>,
    %c7_i32_159 = arith.constant 7 : i32
    %c2_i32_160 = arith.constant 2 : i32
    %405 = arith.muli %c2_i32_160, %c7_i32_159 : i32
    %c7_i32_161 = arith.constant 7 : i32
    %406 = arith.subi %c7_i32_161, %405 : i32
    %407 = arith.muli %arg0, %406 : i32
    %408 = arith.addi %c7_i32_159, %407 : i32
    %409 = arith.truncf %399 : vector<8x32xf32> to vector<8x32xbf16>
    %c0_162 = arith.constant 0 : index
    %410 = arith.index_cast %408 : i32 to index
    %c0_163 = arith.constant 0 : index
    %c0_164 = arith.constant 0 : index
    %411 = vector.load %arg2[%c0_162, %410, %c0_163, %c0_164] : memref<1x8x8x128xbf16, #tpu.memory_space<vmem>>, vector<1x1x8x128xbf16>
    %412 = vector.shape_cast %411 : vector<1x1x8x128xbf16> to vector<8x128xbf16>
    %413 = vector.extract_strided_slice %412 {offsets = [0, 0], sizes = [8, 32], strides = [1, 1]} : vector<8x128xbf16> to vector<8x32xbf16>
    %414 = arith.extf %413 : vector<8x32xbf16> to vector<8x32xf32>
    %cst_165 = arith.constant dense<0.000000e+00> : vector<8x32xf32>
    %415 = tpu.matmul %409, %4, %cst_165 {dimension_numbers = #tpu.dot_dimension_numbers<[1], [0], [0], [1], [0, 0, 1, 1], [], []>} : vector<8x32xbf16>, vector<32x32xbf16>, vector<8x32xf32> -> vector<8x32xf32>
    %416 = arith.addf %414, %415 : vector<8x32xf32>
    %cst_166 = arith.constant 5.000000e-01 : f32
    %417 = vector.broadcast %cst_166 : f32 to vector<8x32xf32>
    %418 = arith.mulf %417, %416 : vector<8x32xf32>
    %419 = math.tanh %418 : vector<8x32xf32>
    %cst_167 = arith.constant 5.000000e-01 : f32
    %420 = vector.broadcast %cst_167 : f32 to vector<8x32xf32>
    %421 = arith.mulf %420, %419 : vector<8x32xf32>
    %cst_168 = arith.constant 5.000000e-01 : f32
    %422 = vector.broadcast %cst_168 : f32 to vector<8x32xf32>
    %423 = arith.addf %421, %422 : vector<8x32xf32>
    %424 = vector.extract_strided_slice %412 {offsets = [0, 32], sizes = [8, 32], strides = [1, 1]} : vector<8x128xbf16> to vector<8x32xbf16>
    %425 = arith.extf %424 : vector<8x32xbf16> to vector<8x32xf32>
    %cst_169 = arith.constant dense<0.000000e+00> : vector<8x32xf32>
    %426 = tpu.matmul %409, %6, %cst_169 {dimension_numbers = #tpu.dot_dimension_numbers<[1], [0], [0], [1], [0, 0, 1, 1], [], []>} : vector<8x32xbf16>, vector<32x32xbf16>, vector<8x32xf32> -> vector<8x32xf32>
    %427 = arith.addf %425, %426 : vector<8x32xf32>
    %cst_170 = arith.constant 5.000000e-01 : f32
    %428 = vector.broadcast %cst_170 : f32 to vector<8x32xf32>
    %429 = arith.mulf %428, %427 : vector<8x32xf32>
    %430 = math.tanh %429 : vector<8x32xf32>
    %cst_171 = arith.constant 5.000000e-01 : f32
    %431 = vector.broadcast %cst_171 : f32 to vector<8x32xf32>
    %432 = arith.mulf %431, %430 : vector<8x32xf32>
    %cst_172 = arith.constant 5.000000e-01 : f32
    %433 = vector.broadcast %cst_172 : f32 to vector<8x32xf32>
    %434 = arith.addf %432, %433 : vector<8x32xf32>
    %435 = vector.extract_strided_slice %412 {offsets = [0, 64], sizes = [8, 32], strides = [1, 1]} : vector<8x128xbf16> to vector<8x32xbf16>
    %436 = arith.extf %435 : vector<8x32xbf16> to vector<8x32xf32>
    %cst_173 = arith.constant dense<0.000000e+00> : vector<8x32xf32>
    %437 = tpu.matmul %409, %8, %cst_173 {dimension_numbers = #tpu.dot_dimension_numbers<[1], [0], [0], [1], [0, 0, 1, 1], [], []>} : vector<8x32xbf16>, vector<32x32xbf16>, vector<8x32xf32> -> vector<8x32xf32>
    %438 = arith.addf %436, %437 : vector<8x32xf32>
    %439 = math.tanh %438 : vector<8x32xf32>
    %440 = arith.mulf %434, %386 : vector<8x32xf32>
    %441 = arith.mulf %423, %439 : vector<8x32xf32>
    %442 = arith.addf %440, %441 : vector<8x32xf32>
    %443 = vector.extract_strided_slice %412 {offsets = [0, 96], sizes = [8, 32], strides = [1, 1]} : vector<8x128xbf16> to vector<8x32xbf16>
    %444 = arith.extf %443 : vector<8x32xbf16> to vector<8x32xf32>
    %cst_174 = arith.constant dense<0.000000e+00> : vector<8x32xf32>
    %445 = tpu.matmul %409, %10, %cst_174 {dimension_numbers = #tpu.dot_dimension_numbers<[1], [0], [0], [1], [0, 0, 1, 1], [], []>} : vector<8x32xbf16>, vector<32x32xbf16>, vector<8x32xf32> -> vector<8x32xf32>
    %446 = arith.addf %444, %445 : vector<8x32xf32>
    %cst_175 = arith.constant 5.000000e-01 : f32
    %447 = vector.broadcast %cst_175 : f32 to vector<8x32xf32>
    %448 = arith.mulf %447, %446 : vector<8x32xf32>
    %449 = math.tanh %448 : vector<8x32xf32>
    %cst_176 = arith.constant 5.000000e-01 : f32
    %450 = vector.broadcast %cst_176 : f32 to vector<8x32xf32>
    %451 = arith.mulf %450, %449 : vector<8x32xf32>
    %cst_177 = arith.constant 5.000000e-01 : f32
    %452 = vector.broadcast %cst_177 : f32 to vector<8x32xf32>
    %453 = arith.addf %451, %452 : vector<8x32xf32>
    %454 = math.tanh %442 : vector<8x32xf32>
    %455 = arith.mulf %453, %454 : vector<8x32xf32>
    %456 = arith.truncf %455 : vector<8x32xf32> to vector<8x32xbf16>
    %c0_178 = arith.constant 0 : index
    %457 = arith.index_cast %408 : i32 to index
    %c0_179 = arith.constant 0 : index
    %c0_180 = arith.constant 0 : index
    %458 = vector.load %arg4[%c0_178, %457, %c0_179, %c0_180] : memref<1x8x8x32xbf16, #tpu.memory_space<vmem>>, vector<1x1x8x32xbf16>
    %459 = vector.shape_cast %458 : vector<1x1x8x32xbf16> to vector<8x32xbf16>
    %460 = vector.shape_cast %456 : vector<8x32xbf16> to vector<1x1x8x32xbf16>
    tpu.vector_store %arg4[%c0_178, %457, %c0_179, %c0_180], %460 {strides = array<i32>} : memref<1x8x8x32xbf16, #tpu.memory_space<vmem>>, vector<1x1x8x32xbf16>,
    %c8_i32 = arith.constant 8 : i32
    %c0_181 = arith.constant 0 : index
    %c0_182 = arith.constant 0 : index
    %461 = vector.load %arg5[%c0_181, %c0_182] : memref<8x32xf32, #tpu.memory_space<vmem>>, vector<8x32xf32>
    tpu.vector_store %arg5[%c0_181, %c0_182], %455 {strides = array<i32>} : memref<8x32xf32, #tpu.memory_space<vmem>>, vector<8x32xf32>,
    %c0_183 = arith.constant 0 : index
    %c0_184 = arith.constant 0 : index
    %462 = vector.load %arg6[%c0_183, %c0_184] : memref<8x32xf32, #tpu.memory_space<vmem>>, vector<8x32xf32>
    tpu.vector_store %arg6[%c0_183, %c0_184], %442 {strides = array<i32>} : memref<8x32xf32, #tpu.memory_space<vmem>>, vector<8x32xf32>,
    return
  }
  func.func @transform_0(%arg0: i32, %arg1: i32) -> (i32, i32, i32, i32) {
    %c2_i32 = arith.constant 2 : i32
    %0 = arith.muli %c2_i32, %arg1 : i32
    %c0_i32 = arith.constant 0 : i32
    %1 = arith.subi %c0_i32, %0 : i32
    %2 = arith.muli %arg0, %1 : i32
    %3 = arith.addi %arg1, %2 : i32
    %c0_i32_0 = arith.constant 0 : i32
    %c0_i32_1 = arith.constant 0 : i32
    %c0_i32_2 = arith.constant 0 : i32
    return %arg0, %3, %c0_i32_0, %c0_i32_1 : i32, i32, i32, i32
  }
  func.func @transform_1(%arg0: i32, %arg1: i32) -> (i32, i32, i32) {
    %c0_i32 = arith.constant 0 : i32
    %c0_i32_0 = arith.constant 0 : i32
    %c0_i32_1 = arith.constant 0 : i32
    return %arg0, %c0_i32, %c0_i32_0 : i32, i32, i32
  }
  func.func @transform_2(%arg0: i32, %arg1: i32) -> (i32, i32, i32, i32) {
    %c2_i32 = arith.constant 2 : i32
    %0 = arith.muli %c2_i32, %arg1 : i32
    %c0_i32 = arith.constant 0 : i32
    %1 = arith.subi %c0_i32, %0 : i32
    %2 = arith.muli %arg0, %1 : i32
    %3 = arith.addi %arg1, %2 : i32
    %c0_i32_0 = arith.constant 0 : i32
    %c0_i32_1 = arith.constant 0 : i32
    %c0_i32_2 = arith.constant 0 : i32
    return %arg0, %3, %c0_i32_0, %c0_i32_1 : i32, i32, i32, i32
  }
}

module attributes {stable_mosaic.version = 11 : i64} {
  func.func @kernel(%arg0: i32, %arg1: memref<64x32xbf16, #tpu.memory_space<vmem>>, %arg2: memref<64x32xbf16, #tpu.memory_space<vmem>>, %arg3: memref<32x128xbf16, #tpu.memory_space<vmem>>, %arg4: memref<32x128xbf16, #tpu.memory_space<vmem>>, %arg5: memref<1x128xf32, #tpu.memory_space<vmem>>, %arg6: memref<64x128xf32, #tpu.memory_space<vmem>>) attributes {dimension_semantics = [#tpu.dimension_semantics<parallel>], iteration_bounds = array<i64: 1>, scalar_prefetch = 0 : i64, scratch_operands = 0 : i64, tpu.core_type = #tpu.core_type<tc>, window_params = [{transform_indices = @transform_0, window_bounds = array<i64: 64, 32>}, {transform_indices = @transform_1, window_bounds = array<i64: 64, 32>}, {pipeline_mode = #tpu.pipeline_mode<synchronous>, transform_indices = @transform_2, window_bounds = array<i64: 32, 128>}, {pipeline_mode = #tpu.pipeline_mode<synchronous>, transform_indices = @transform_3, window_bounds = array<i64: 32, 128>}, {pipeline_mode = #tpu.pipeline_mode<synchronous>, transform_indices = @transform_4, window_bounds = array<i64: 1, 128>}, {transform_indices = @transform_5, window_bounds = array<i64: 64, 128>}]} {
    %c0 = arith.constant 0 : index
    %c0_0 = arith.constant 0 : index
    %0 = vector.load %arg1[%c0, %c0_0] : memref<64x32xbf16, #tpu.memory_space<vmem>>, vector<64x32xbf16>
    %c0_1 = arith.constant 0 : index
    %c0_2 = arith.constant 0 : index
    %1 = vector.load %arg3[%c0_1, %c0_2] : memref<32x128xbf16, #tpu.memory_space<vmem>>, vector<32x128xbf16>
    %cst = arith.constant dense<0.000000e+00> : vector<64x128xf32>
    %2 = tpu.matmul %0, %1, %cst {dimension_numbers = #tpu.dot_dimension_numbers<[1], [0], [0], [1], [0, 0, 1, 1], [], []>} : vector<64x32xbf16>, vector<32x128xbf16>, vector<64x128xf32> -> vector<64x128xf32>
    %c0_3 = arith.constant 0 : index
    %c0_4 = arith.constant 0 : index
    %3 = vector.load %arg2[%c0_3, %c0_4] : memref<64x32xbf16, #tpu.memory_space<vmem>>, vector<64x32xbf16>
    %c0_5 = arith.constant 0 : index
    %c0_6 = arith.constant 0 : index
    %4 = vector.load %arg4[%c0_5, %c0_6] : memref<32x128xbf16, #tpu.memory_space<vmem>>, vector<32x128xbf16>
    %cst_7 = arith.constant dense<0.000000e+00> : vector<64x128xf32>
    %5 = tpu.matmul %3, %4, %cst_7 {dimension_numbers = #tpu.dot_dimension_numbers<[1], [0], [0], [1], [0, 0, 1, 1], [], []>} : vector<64x32xbf16>, vector<32x128xbf16>, vector<64x128xf32> -> vector<64x128xf32>
    %6 = arith.addf %2, %5 : vector<64x128xf32>
    %c0_8 = arith.constant 0 : index
    %c0_9 = arith.constant 0 : index
    %7 = vector.load %arg5[%c0_8, %c0_9] : memref<1x128xf32, #tpu.memory_space<vmem>>, vector<1x128xf32>
    %8 = vector.broadcast %7 : vector<1x128xf32> to vector<64x128xf32>
    %9 = arith.addf %6, %8 : vector<64x128xf32>
    %cst_10 = arith.constant 5.000000e-01 : f32
    %10 = vector.broadcast %cst_10 : f32 to vector<64x128xf32>
    %11 = arith.mulf %10, %9 : vector<64x128xf32>
    %12 = math.tanh %11 : vector<64x128xf32>
    %cst_11 = arith.constant 5.000000e-01 : f32
    %13 = vector.broadcast %cst_11 : f32 to vector<64x128xf32>
    %14 = arith.mulf %13, %12 : vector<64x128xf32>
    %cst_12 = arith.constant 5.000000e-01 : f32
    %15 = vector.broadcast %cst_12 : f32 to vector<64x128xf32>
    %16 = arith.addf %14, %15 : vector<64x128xf32>
    %c0_13 = arith.constant 0 : index
    %c0_14 = arith.constant 0 : index
    %17 = vector.load %arg6[%c0_13, %c0_14] : memref<64x128xf32, #tpu.memory_space<vmem>>, vector<64x128xf32>
    tpu.vector_store %arg6[%c0_13, %c0_14], %16 {strides = array<i32>} : memref<64x128xf32, #tpu.memory_space<vmem>>, vector<64x128xf32>,
    return
  }
  func.func @transform_0(%arg0: i32) -> (i32, i32) {
    %c0_i32 = arith.constant 0 : i32
    %c0_i32_0 = arith.constant 0 : i32
    return %arg0, %c0_i32 : i32, i32
  }
  func.func @transform_1(%arg0: i32) -> (i32, i32) {
    %c0_i32 = arith.constant 0 : i32
    %c0_i32_0 = arith.constant 0 : i32
    return %arg0, %c0_i32 : i32, i32
  }
  func.func @transform_2(%arg0: i32) -> (i32, i32) {
    %c0_i32 = arith.constant 0 : i32
    %c0_i32_0 = arith.constant 0 : i32
    %c0_i32_1 = arith.constant 0 : i32
    return %c0_i32, %c0_i32_0 : i32, i32
  }
  func.func @transform_3(%arg0: i32) -> (i32, i32) {
    %c0_i32 = arith.constant 0 : i32
    %c0_i32_0 = arith.constant 0 : i32
    %c0_i32_1 = arith.constant 0 : i32
    return %c0_i32, %c0_i32_0 : i32, i32
  }
  func.func @transform_4(%arg0: i32) -> (i32, i32) {
    %c0_i32 = arith.constant 0 : i32
    %c0_i32_0 = arith.constant 0 : i32
    %c0_i32_1 = arith.constant 0 : i32
    return %c0_i32, %c0_i32_0 : i32, i32
  }
  func.func @transform_5(%arg0: i32) -> (i32, i32) {
    %c0_i32 = arith.constant 0 : i32
    %c0_i32_0 = arith.constant 0 : i32
    return %arg0, %c0_i32 : i32, i32
  }
}

</mosaic_0001>

<llo_original>
// kernel: blstm2_forward.5
$region0: #{blstm2_forward.5}
  #allocation0 [shape = 'u32[]', space=smem, size = 0x4, offset = 0x4, fixed_abs, tag = 'smem constant byte address 0x4 - core index']
  #allocation1 [shape = 'u32[72,128]{1,0:T(1,128)}', space=vmem, size = 0x9000, scoped, tag = 'internal scratch']
  %s0 = inlined_call_operand.vmem [shape: bf16[64,32], index: 0, kind: input, shape index: {}]
  %s1 = inlined_call_operand.vmem [shape: bf16[64,32], index: 1, kind: input, shape index: {}]
  %s2 = inlined_call_operand.vmem [shape: bf16[32,128], index: 2, kind: input, shape index: {}]
  %s3 = inlined_call_operand.vmem [shape: bf16[32,128], index: 3, kind: input, shape index: {}]
  %s4 = inlined_call_operand.vmem [shape: f32[1,128], index: 4, kind: input, shape index: {}]
  %s5 = inlined_call_operand.vmem [shape: f32[64,128], index: 5, kind: output, shape index: {}]
  %s6 = sld [smem:[#allocation0]]
  $region30: #{blstm2_forward.5} parent=0
    _
  %s8 = ssub.s32 1, %s6
  %s9 = scalar_select 0, %s8, %s6
  // Predicated region
  $region2: #{blstm2_forward.5} parent=0 // pred_check
    _
  $region3: #{blstm2_forward.5} parent=0 // pred_check_branch
    %11 = sbr.rel (0) target = $region5
  $region4: #{blstm2_forward.5} parent=0 // pred_region
    _
  $region5: #{blstm2_forward.5} parent=0 // pred_fallthru
    _
  // Predicated region
  $region6: #{blstm2_forward.5} parent=0 // pred_check
    _
  $region7: #{blstm2_forward.5} parent=0 // pred_check_branch
    %13 = sbr.rel (0) target = $region9
  $region8: #{blstm2_forward.5} parent=0 // pred_region
    _
  $region9: #{blstm2_forward.5} parent=0 // pred_fallthru
    _
  // Predicated region
  $region10: #{blstm2_forward.5} parent=0 // pred_check
    _
  $region11: #{blstm2_forward.5} parent=0 // pred_check_branch
    %15 = sbr.rel (0) target = $region13
  $region12: #{blstm2_forward.5} parent=0 // pred_region
    _
  $region13: #{blstm2_forward.5} parent=0 // pred_fallthru
    _
  // Predicated region
  $region14: #{blstm2_forward.5} parent=0 // pred_check
    _
  $region15: #{blstm2_forward.5} parent=0 // pred_check_branch
    %17 = sbr.rel (0) target = $region17
  $region16: #{blstm2_forward.5} parent=0 // pred_region
    _
  $region17: #{blstm2_forward.5} parent=0 // pred_fallthru
    _
  // Predicated region
  $region18: #{blstm2_forward.5} parent=0 // pred_check
    _
  $region19: #{blstm2_forward.5} parent=0 // pred_check_branch
    %19 = sbr.rel (0) target = $region21
  $region20: #{blstm2_forward.5} parent=0 // pred_region
    _
  $region21: #{blstm2_forward.5} parent=0 // pred_fallthru
    _
  %v21 = vld [vmem:[%s0] sm:$0xf]
  %v22 = vld [vmem:[%s0 + $0x4] sm:$0xf]
  %v23 = vld [vmem:[%s0 + $0x8] sm:$0xf]
  %v24 = vld [vmem:[%s0 + $0xc] sm:$0xf]
  %v25 = vld [vmem:[%s0 + $0x10] sm:$0xf]
  %v26 = vld [vmem:[%s0 + $0x14] sm:$0xf]
  %v27 = vld [vmem:[%s0 + $0x18] sm:$0xf]
  %v28 = vld [vmem:[%s0 + $0x1c] sm:$0xf]
  %v29 = vld [vmem:[%s2] sm:$0xf]
  %v30 = vld [vmem:[%s2 + $0x4] sm:$0xf]
  %v31 = vld [vmem:[%s2 + $0x8] sm:$0xf]
  %v32 = vld [vmem:[%s2 + $0xc] sm:$0xf]
  %v33 = vld [vmem:[%s1] sm:$0xf]
  %v34 = vld [vmem:[%s1 + $0x4] sm:$0xf]
  %v35 = vld [vmem:[%s1 + $0x8] sm:$0xf]
  %v36 = vld [vmem:[%s1 + $0xc] sm:$0xf]
  %v37 = vld [vmem:[%s1 + $0x10] sm:$0xf]
  %v38 = vld [vmem:[%s1 + $0x14] sm:$0xf]
  %v39 = vld [vmem:[%s1 + $0x18] sm:$0xf]
  %v40 = vld [vmem:[%s1 + $0x1c] sm:$0xf]
  %v41 = vld [vmem:[%s3] sm:$0xf]
  %v42 = vld [vmem:[%s3 + $0x4] sm:$0xf]
  %v43 = vld [vmem:[%s3 + $0x8] sm:$0xf]
  %v44 = vld [vmem:[%s3 + $0xc] sm:$0xf]
  %v53 = vunpack.c.l.b16 %v33
  %v54 = vunpack.c.l.b16 %v34
  %v55 = vunpack.c.l.b16 %v35
  %v56 = vunpack.c.l.b16 %v36
  %v57 = vunpack.c.l.b16 %v37
  %v58 = vunpack.c.l.b16 %v38
  %v59 = vunpack.c.l.b16 %v39
  %v60 = vunpack.c.l.b16 %v40
  %v61 = vpack.c.b16 %v54, %v53
  %v62 = vpack.c.b16 %v56, %v55
  %v63 = vpack.c.b16 %v58, %v57
  %v64 = vpack.c.b16 %v60, %v59
  %v69 = vunpack.c.l.b16 %v41
  %v70 = vunpack.c.l.b16 %v42
  %v71 = vunpack.c.l.b16 %v43
  %v72 = vunpack.c.l.b16 %v44
  %v73 = vpack.c.b16 %v70, %v69
  %v74 = vpack.c.b16 %v72, %v71
  %vm77 = vcmask 261120
  %v79 = vsel %vm77, %v61, 0
  %v82 = vsel %vm77, %v62, 0
  %v85 = vsel %vm77, %v63, 0
  %v88 = vsel %vm77, %v64, 0
  %90 = vmatpush.bf16.msra.mxu0 0
  %91 = vmatpush.bf16.msra.mxu0 0
  %92 = vmatpush.bf16.msra.mxu0 0
  %93 = vmatpush.bf16.msra.mxu0 0
  %94 = vmatpush.bf16.msra.mxu0 0
  %95 = vmatpush.bf16.msra.mxu0 0
  %96 = vmatpush.bf16.msra.mxu0 %v74
  %97 = vmatpush.bf16.msra.mxu0 %v73
  %98 = vmatmul.bf16.gmra.mxu0 %v79
  %v99 = vpop.f32.mrf.mxu0
  %v100 = vadd.f32 0.0, %v99
  %v101 = vpop.f32.mrf.mxu0
  %v102 = vadd.f32 0.0, %v101
  %103 = vmatmul.bf16.gmra.mxu0 %v82
  %v104 = vpop.f32.mrf.mxu0
  %v105 = vadd.f32 0.0, %v104
  %v106 = vpop.f32.mrf.mxu0
  %v107 = vadd.f32 0.0, %v106
  %108 = vmatmul.bf16.gmra.mxu0 %v85
  %v109 = vpop.f32.mrf.mxu0
  %v110 = vadd.f32 0.0, %v109
  %v111 = vpop.f32.mrf.mxu0
  %v112 = vadd.f32 0.0, %v111
  %113 = vmatmul.bf16.gmra.mxu0 %v88
  %v114 = vpop.f32.mrf.mxu0
  %v115 = vadd.f32 0.0, %v114
  %v116 = vpop.f32.mrf.mxu0
  %v117 = vadd.f32 0.0, %v116
  %118 = vdwg.mxu0
  %v127 = vunpack.c.l.b16 %v21
  %v128 = vunpack.c.l.b16 %v22
  %v129 = vunpack.c.l.b16 %v23
  %v130 = vunpack.c.l.b16 %v24
  %v131 = vunpack.c.l.b16 %v25
  %v132 = vunpack.c.l.b16 %v26
  %v133 = vunpack.c.l.b16 %v27
  %v134 = vunpack.c.l.b16 %v28
  %v135 = vpack.c.b16 %v128, %v127
  %v136 = vpack.c.b16 %v130, %v129
  %v137 = vpack.c.b16 %v132, %v131
  %v138 = vpack.c.b16 %v134, %v133
  %v143 = vunpack.c.l.b16 %v29
  %v144 = vunpack.c.l.b16 %v30
  %v145 = vunpack.c.l.b16 %v31
  %v146 = vunpack.c.l.b16 %v32
  %v147 = vpack.c.b16 %v144, %v143
  %v148 = vpack.c.b16 %v146, %v145
  %v152 = vsel %vm77, %v135, 0
  %v155 = vsel %vm77, %v136, 0
  %v158 = vsel %vm77, %v137, 0
  %v161 = vsel %vm77, %v138, 0
  %163 = vmatpush.bf16.msra.mxu0 0
  %164 = vmatpush.bf16.msra.mxu0 0
  %165 = vmatpush.bf16.msra.mxu0 0
  %166 = vmatpush.bf16.msra.mxu0 0
  %167 = vmatpush.bf16.msra.mxu0 0
  %168 = vmatpush.bf16.msra.mxu0 0
  %169 = vmatpush.bf16.msra.mxu0 %v148
  %170 = vmatpush.bf16.msra.mxu0 %v147
  %171 = vmatmul.bf16.gmra.mxu0 %v152
  %v172 = vpop.f32.mrf.mxu0
  %v173 = vadd.f32 %v100, %v172
  %v174 = vpop.f32.mrf.mxu0
  %v175 = vadd.f32 %v102, %v174
  %176 = vmatmul.bf16.gmra.mxu0 %v155
  %v177 = vpop.f32.mrf.mxu0
  %v178 = vadd.f32 %v105, %v177
  %v179 = vpop.f32.mrf.mxu0
  %v180 = vadd.f32 %v107, %v179
  %181 = vmatmul.bf16.gmra.mxu0 %v158
  %v182 = vpop.f32.mrf.mxu0
  %v183 = vadd.f32 %v110, %v182
  %v184 = vpop.f32.mrf.mxu0
  %v185 = vadd.f32 %v112, %v184
  %186 = vmatmul.bf16.gmra.mxu0 %v161
  %v187 = vpop.f32.mrf.mxu0
  %v188 = vadd.f32 %v115, %v187
  %v189 = vpop.f32.mrf.mxu0
  %v190 = vadd.f32 %v117, %v189
  %191 = vdwg.mxu0
  %v192 = vld [vmem:[%s4] sm:$0x1]
  %v194 = vperm.slane %v192, 0
  %v196 = vadd.f32 %v173, %v194
  %v197 = vadd.f32 %v175, %v194
  %v198 = vadd.f32 %v178, %v194
  %v199 = vadd.f32 %v180, %v194
  %v200 = vadd.f32 %v183, %v194
  %v201 = vadd.f32 %v185, %v194
  %v202 = vadd.f32 %v188, %v194
  %v203 = vadd.f32 %v190, %v194
  %v204 = vmul.f32 %v196, 0.5
  %v205 = vmul.f32 %v197, 0.5
  %v206 = vmul.f32 %v198, 0.5
  %v207 = vmul.f32 %v199, 0.5
  %v208 = vmul.f32 %v200, 0.5
  %v209 = vmul.f32 %v201, 0.5
  %v210 = vmul.f32 %v202, 0.5
  %v211 = vmul.f32 %v203, 0.5
  %v212 = vtanh.pop %v204
  %v213 = vtanh.pop %v205
  %v214 = vtanh.pop %v206
  %v215 = vtanh.pop %v207
  %v216 = vtanh.pop %v208
  %v217 = vtanh.pop %v209
  %v218 = vtanh.pop %v210
  %v219 = vtanh.pop %v211
  %v220 = vmul.f32 %v212, 0.5
  %v221 = vmul.f32 %v213, 0.5
  %v222 = vmul.f32 %v214, 0.5
  %v223 = vmul.f32 %v215, 0.5
  %v224 = vmul.f32 %v216, 0.5
  %v225 = vmul.f32 %v217, 0.5
  %v226 = vmul.f32 %v218, 0.5
  %v227 = vmul.f32 %v219, 0.5
  %v228 = vadd.f32 %v220, 0.5
  %v229 = vadd.f32 %v221, 0.5
  %v230 = vadd.f32 %v222, 0.5
  %v231 = vadd.f32 %v223, 0.5
  %v232 = vadd.f32 %v224, 0.5
  %v233 = vadd.f32 %v225, 0.5
  %v234 = vadd.f32 %v226, 0.5
  %v235 = vadd.f32 %v227, 0.5
  %236 = vst [vmem:[%s5] sm:$0xff] %v228
  %237 = vst [vmem:[%s5 + $0x8] sm:$0xff] %v229
  %238 = vst [vmem:[%s5 + $0x10] sm:$0xff] %v230
  %239 = vst [vmem:[%s5 + $0x18] sm:$0xff] %v231
  %240 = vst [vmem:[%s5 + $0x20] sm:$0xff] %v232
  %241 = vst [vmem:[%s5 + $0x28] sm:$0xff] %v233
  %242 = vst [vmem:[%s5 + $0x30] sm:$0xff] %v234
  %243 = vst [vmem:[%s5 + $0x38] sm:$0xff] %v235
  // Predicated region
  $region22: #{blstm2_forward.5} parent=0 // pred_check
    _
  $region23: #{blstm2_forward.5} parent=0 // pred_check_branch
    %245 = sbr.rel (0) target = $region25
  $region24: #{blstm2_forward.5} parent=0 // pred_region
    _
  $region25: #{blstm2_forward.5} parent=0 // pred_fallthru
    _
  // Predicated region
  $region26: #{blstm2_forward.5} parent=0 // pred_check
    _
  $region27: #{blstm2_forward.5} parent=0 // pred_check_branch
    %247 = sbr.rel (0) target = $region29
  $region28: #{blstm2_forward.5} parent=0 // pred_region
    _
  $region29: #{blstm2_forward.5} parent=0 // pred_fallthru
    _

// kernel: blstm2_forward.3
$region0: #{blstm2_forward.3}
  #allocation0 [shape = 'u32[]', space=smem, size = 0x4, offset = 0x4, fixed_abs, tag = 'smem constant byte address 0x4 - core index']
  #allocation1 [shape = 'u32[72,128]{1,0:T(1,128)}', space=vmem, size = 0x9000, scoped, tag = 'internal scratch']
  #allocation2 [shape = 'f32[8,32]{1,0:T(8,128)}', space=vmem, size = 0x1000, scoped, tag = 'scratch operand']
  #allocation3 [shape = 'f32[8,32]{1,0:T(8,128)}', space=vmem, size = 0x1000, scoped, tag = 'scratch operand']
  %s0 = inlined_call_operand.vmem [shape: bf16[2,8,8,128], index: 0, kind: input, shape index: {}]
  %s1 = inlined_call_operand.vmem [shape: bf16[2,32,128], index: 1, kind: input, shape index: {}]
  %s2 = inlined_call_operand.vmem [shape: bf16[2,8,8,32], index: 2, kind: output, shape index: {}]
  %s3 = sld [smem:[#allocation0]]
  $region45: #{blstm2_forward.3} parent=0
    _
  %s5 = ssub.s32 1, %s3
  %s6 = scalar_select 0, %s5, %s3
  loop: start=0, step=1, limit=4
  $region2: #{blstm2_forward.3} parent=0 // loop_pre_header
    _
  $region3: #{blstm2_forward.3} parent=0 // loop_header
    %s8 = sphi 0, %s12
    %p9 = scmp.ge.s32.totalorder %s8, 4
    %s15 = sphi 0, %s27
    %s16 = sphi 0, %s23
    %s17 = sphi 0, %s15
    %s18 = sphi 0, %s16
    %s19 = sphi 0, %s17
    %s20 = sphi 0, %s18
    %s40 = sphi 0, %s42
    %s43 = sphi 0, %s40
    %s44 = sphi 0, %s43
    %s60 = sphi 0, %s44
    %s66 = sphi 0, %s68
    %s69 = sphi 0, %s66
    %s70 = sphi 0, %s69
    %s86 = sphi 0, %s70
    %s102 = sphi 0, %s104
    %s105 = sphi 0, %s102
    %s106 = sphi 0, %s105
    %s122 = sphi 0, %s106
  $region4: #{blstm2_forward.3} parent=0 // loop_header_branch
    %11 = sbr.rel (%p9) target = $region8
  $region5: #{blstm2_forward.3} parent=0 // loop_body
    %s13 = ssub.s32 %s8, 1
    %s14 = ssub.s32 %s8, 2
    %s21 = sadd.s32 1, %s16
    %p22 = scmp.ge.s32.totalorder %s21, 1
    %s23 = scalar_select %p22, 0, %s21
    %s24 = sadd.s32 1, %s15
    %s25 = scalar_select %p22, %s24, %s15
    %p26 = scmp.ge.s32.totalorder %s25, 2
    %s27 = scalar_select %p26, 0, %s25
    %s28 = smul.u32 %s16, 2
    %s29 = ssub.s32 0, %s28
    %s30 = smul.u32 %s15, %s29
    %s31 = sadd.s32 %s16, %s30
    %s32 = smul.u32 %s23, 2
    %s33 = ssub.s32 0, %s32
    %s34 = smul.u32 %s27, %s33
    %s35 = sadd.s32 %s23, %s34
    %s36 = ssub.s32 %s15, %s27
    %s37 = ssub.s32 %s31, %s35
    %s38 = sor.u32 %s36, %s37
    %p39 = scmp.eq.s32.totalorder %s38, 0
    %s41 = sadd.s32 %s40, 1
    %s42 = scalar_select %p39, %s40, %s41
    %p45 = pneg %p39
    %p46 = scmp.eq.s32.totalorder %s8, 1
    %p47 = por %p45, %p46
    %p48 = scmp.ne.s32.totalorder %s40, %s43
    %p49 = scmp.eq.s32.totalorder %s8, 0
    %p50 = por %p48, %p49
    %p51 = scmp.ne.s32.totalorder %s40, %s43
    %p52 = scmp.eq.s32.totalorder %s13, 1
    %p53 = por %p51, %p52
    %p54 = scmp.ne.s32.totalorder %s43, %s44
    %p55 = scmp.eq.s32.totalorder %s13, 0
    %p56 = por %p54, %p55
    %p57 = scmp.ne.s32.totalorder %s43, %s44
    %p58 = scmp.eq.s32.totalorder %s14, 1
    %p59 = por %p57, %p58
    %p61 = scmp.ne.s32.totalorder %s44, %s60
    %p62 = scmp.eq.s32.totalorder %s14, 0
    %p63 = por %p61, %p62
    %s64 = ssub.s32 %s15, %s27
    %p65 = scmp.eq.s32.totalorder %s64, 0
    %s67 = sadd.s32 %s66, 1
    %s68 = scalar_select %p65, %s66, %s67
    %p71 = pneg %p65
    %p72 = scmp.eq.s32.totalorder %s8, 1
    %p73 = por %p71, %p72
    %p74 = scmp.ne.s32.totalorder %s66, %s69
    %p75 = scmp.eq.s32.totalorder %s8, 0
    %p76 = por %p74, %p75
    %p77 = scmp.ne.s32.totalorder %s66, %s69
    %p78 = scmp.eq.s32.totalorder %s13, 1
    %p79 = por %p77, %p78
    %p80 = scmp.ne.s32.totalorder %s69, %s70
    %p81 = scmp.eq.s32.totalorder %s13, 0
    %p82 = por %p80, %p81
    %p83 = scmp.ne.s32.totalorder %s69, %s70
    %p84 = scmp.eq.s32.totalorder %s14, 1
    %p85 = por %p83, %p84
    %p87 = scmp.ne.s32.totalorder %s70, %s86
    %p88 = scmp.eq.s32.totalorder %s14, 0
    %p89 = por %p87, %p88
    %s90 = smul.u32 %s16, 2
    %s91 = ssub.s32 0, %s90
    %s92 = smul.u32 %s15, %s91
    %s93 = sadd.s32 %s16, %s92
    %s94 = smul.u32 %s23, 2
    %s95 = ssub.s32 0, %s94
    %s96 = smul.u32 %s27, %s95
    %s97 = sadd.s32 %s23, %s96
    %s98 = ssub.s32 %s15, %s27
    %s99 = ssub.s32 %s93, %s97
    %s100 = sor.u32 %s98, %s99
    %p101 = scmp.eq.s32.totalorder %s100, 0
    %s103 = sadd.s32 %s102, 1
    %s104 = scalar_select %p101, %s102, %s103
    %p107 = pneg %p101
    %p108 = scmp.eq.s32.totalorder %s8, 1
    %p109 = por %p107, %p108
    %p110 = scmp.ne.s32.totalorder %s102, %s105
    %p111 = scmp.eq.s32.totalorder %s8, 0
    %p112 = por %p110, %p111
    %p113 = scmp.ne.s32.totalorder %s102, %s105
    %p114 = scmp.eq.s32.totalorder %s13, 1
    %p115 = por %p113, %p114
    %p116 = scmp.ne.s32.totalorder %s105, %s106
    %p117 = scmp.eq.s32.totalorder %s13, 0
    %p118 = por %p116, %p117
    %p119 = scmp.ne.s32.totalorder %s105, %s106
    %p120 = scmp.eq.s32.totalorder %s14, 1
    %p121 = por %p119, %p120
    %p123 = scmp.ne.s32.totalorder %s106, %s122
    %p124 = scmp.eq.s32.totalorder %s14, 0
    %p125 = por %p123, %p124
    %p126 = scmp.le.s32.totalorder 1, %s8
    %p127 = scmp.lt.s32.totalorder %s8, 3
    %p128 = pnand %p126, %p127
    %p129 = pneg %p128
    // Predicated region
    $region9: #{blstm2_forward.3} parent=5 // pred_check
      _
    $region10: #{blstm2_forward.3} parent=5 // pred_check_branch
      %131 = sbr.rel (%p128) target = $region12
    $region11: #{blstm2_forward.3} parent=5 // pred_region
      %s132 = ssub.s32 %s8, 1
      // Predicated region
      $region13: #{blstm2_forward.3} parent=11 // pred_check
        %p133 = pneg %p82
      $region14: #{blstm2_forward.3} parent=11 // pred_check_branch
        %135 = sbr.rel (%p133) target = $region16
      $region15: #{blstm2_forward.3} parent=11 // pred_region
        %p136 = scmp.lt.s32.totalorder %s17, 1
        %s137 = scalar_select %p136, %s17, 1
        %s138 = smul.addr %s137, 4
        %s139 = smul.addr %s138, 4
        %s140 = scalar_lea.vmem %s1, %s139
      $region16: #{blstm2_forward.3} parent=11 // pred_fallthru
        _
    $region12: #{blstm2_forward.3} parent=5 // pred_fallthru
      _
    %p141 = scmp.lt.s32.totalorder %s8, 2
    // Predicated region
    $region17: #{blstm2_forward.3} parent=5 // pred_check
      %p142 = pneg %p141
    $region18: #{blstm2_forward.3} parent=5 // pred_check_branch
      %144 = sbr.rel (%p142) target = $region20
    $region19: #{blstm2_forward.3} parent=5 // pred_region
      // Predicated region
      $region21: #{blstm2_forward.3} parent=19 // pred_check
        %p145 = pneg %p50
      $region22: #{blstm2_forward.3} parent=19 // pred_check_branch
        %147 = sbr.rel (%p145) target = $region24
      $region23: #{blstm2_forward.3} parent=19 // pred_region
        %s148 = smul.u32 %s16, 2
        %s149 = ssub.s32 0, %s148
        %s150 = smul.u32 %s15, %s149
        %s151 = sadd.s32 %s16, %s150
        %s152 = smul.u32 8, %s151
        %p153 = scmp.lt.s32.totalorder %s15, 1
        %s154 = scalar_select %p153, %s15, 1
        %p155 = scmp.lt.s32.totalorder %s152, 7
        %s156 = scalar_select %p155, %s152, 7
        %s157 = smul.addr %s154, 8
        %s158 = sadd.s32 %s156, %s157
        %s159 = smul.addr %s158, 4
        %s160 = scalar_lea.vmem %s0, %s159
        %s161 = smul.u32 %s16, 2
        %s162 = ssub.s32 0, %s161
        %s163 = smul.u32 %s15, %s162
        %s164 = sadd.s32 %s16, %s163
        %s165 = smul.u32 8, %s164
      $region24: #{blstm2_forward.3} parent=19 // pred_fallthru
        _
    $region20: #{blstm2_forward.3} parent=5 // pred_fallthru
      _
    %p166 = scmp.le.s32.totalorder 1, %s8
    %p167 = scmp.lt.s32.totalorder %s8, 3
    %p168 = pnand %p166, %p167
    %p169 = pneg %p168
    // Predicated region
    $region25: #{blstm2_forward.3} parent=5 // pred_check
      _
    $region26: #{blstm2_forward.3} parent=5 // pred_check_branch
      %171 = sbr.rel (%p168) target = $region28
    $region27: #{blstm2_forward.3} parent=5 // pred_region
      %s172 = ssub.s32 %s8, 1
      %s173 = smul.u32 %s18, 2
      %s174 = ssub.s32 0, %s173
      %s175 = smul.u32 %s17, %s174
      %s176 = sadd.s32 %s18, %s175
      %s177 = smul.u32 8, %s176
      %p178 = scmp.lt.s32.totalorder %s17, 1
      %s179 = scalar_select %p178, %s17, 1
      %p180 = scmp.lt.s32.totalorder %s177, 7
      %s181 = scalar_select %p180, %s177, 7
      %s182 = smul.addr %s179, 8
      %s183 = sadd.s32 %s181, %s182
      %s184 = smul.addr %s183, 4
      %s185 = scalar_lea.vmem %s0, %s184
      %p186 = pneg %p56
      %p187 = pneg %p53
      %p188 = scmp.lt.s32.totalorder %s17, 1
      %s189 = scalar_select %p188, %s17, 1
      %s190 = smul.addr %s189, 4
      %s191 = smul.addr %s190, 4
      %s192 = scalar_lea.vmem %s1, %s191
      %p193 = pneg %p82
      %p194 = pneg %p79
      %p195 = pneg %p118
      %p196 = pneg %p115
      %s197 = smul.u32 %s18, 2
      %s198 = ssub.s32 0, %s197
      %s199 = smul.u32 %s17, %s198
      %s200 = sadd.s32 %s18, %s199
      %s201 = smul.u32 8, %s200
      %p202 = scmp.lt.s32.totalorder %s17, 1
      %s203 = scalar_select %p202, %s17, 1
      %p204 = scmp.lt.s32.totalorder %s201, 7
      %s205 = scalar_select %p204, %s201, 7
      %s206 = smul.addr %s203, 8
      %s207 = sadd.s32 %s205, %s206
      %s208 = smul.addr %s207, 4
      %s209 = scalar_lea.vmem %s2, %s208
      %s210 = smul.u32 %s18, 2
      %s211 = ssub.s32 0, %s210
      %s212 = smul.u32 %s17, %s211
      %s213 = sadd.s32 %s18, %s212
      %s214 = smul.u32 8, %s213
      %p215 = scmp.lt.s32.totalorder %s17, 1
      %s216 = scalar_select %p215, %s17, 1
      %p217 = scmp.lt.s32.totalorder %s214, 7
      %s218 = scalar_select %p217, %s214, 7
      %s219 = smul.addr %s216, 8
      %s220 = sadd.s32 %s218, %s219
      %s221 = smul.addr %s220, 4
      %s222 = scalar_lea.vmem %s0, %s221
      %s223 = smul.u32 %s18, 2
      %s224 = ssub.s32 0, %s223
      %s225 = smul.u32 %s17, %s224
      %s226 = sadd.s32 %s18, %s225
      %s227 = smul.u32 8, %s226
      %p228 = scmp.lt.s32.totalorder %s17, 1
      %s229 = scalar_select %p228, %s17, 1
      %s230 = smul.addr %s229, 4
      %s231 = smul.addr %s230, 4
      %s232 = scalar_lea.vmem %s1, %s231
      %s233 = smul.u32 %s18, 2
      %s234 = ssub.s32 0, %s233
      %s235 = smul.u32 %s17, %s234
      %s236 = sadd.s32 %s18, %s235
      %s237 = smul.u32 8, %s236
      %p238 = scmp.lt.s32.totalorder %s17, 1
      %s239 = scalar_select %p238, %s17, 1
      %p240 = scmp.lt.s32.totalorder %s237, 7
      %s241 = scalar_select %p240, %s237, 7
      %s242 = smul.addr %s239, 8
      %s243 = sadd.s32 %s241, %s242
      %s244 = smul.addr %s243, 4
      %s245 = scalar_lea.vmem %s2, %s244
      %s246 = smul.u32 %s18, 2
      %s247 = ssub.s32 0, %s246
      %s248 = smul.u32 %s17, %s247
      %s249 = sadd.s32 %s18, %s248
      %s250 = smul.u32 8, %s249
      %p252 = scmp.eq.s32.totalorder %s18, 0
      // Predicated region
      $region29: #{blstm2_forward.3} parent=27 // pred_check
        %p253 = pneg %p252
      $region30: #{blstm2_forward.3} parent=27 // pred_check_branch
        %255 = sbr.rel (%p253) target = $region32
      $region31: #{blstm2_forward.3} parent=27 // pred_region
        %vm256 = vcmask 261120
        %257 = vst.msk [vmem:[#allocation2] sm:$0xff] %vm256, 0.0
        %258 = vst.msk [vmem:[#allocation3] sm:$0xff] %vm256, 0.0
      $region32: #{blstm2_forward.3} parent=27 // pred_fallthru
        _
      %v259 = vld [vmem:[%s232] sm:$0xf]
      %v260 = vld [vmem:[%s232 + $0x4] sm:$0xf]
      %v261 = vld [vmem:[%s232 + $0x8] sm:$0xf]
      %v262 = vld [vmem:[%s232 + $0xc] sm:$0xf]
      %v263 = vld [vmem:[#allocation2] sm:$0xff]
      %v264 = vld [vmem:[#allocation3] sm:$0xff]
      %s265 = smul.u32 %s17, 7
      %v266 = vpack.c.bf16 %v263, %v263
      %s267 = smul.addr %s265, 4
      %s268 = scalar_lea.vmem %s222, %s267
      %v269 = vld [vmem:[%s268] sm:$0xf]
      %v270 = vunpack.c.l.bf16 %v269
      %v275 = vunpack.c.l.b16 %v259
      %v276 = vunpack.c.l.b16 %v260
      %v277 = vunpack.c.l.b16 %v261
      %v278 = vunpack.c.l.b16 %v262
      %v279 = vpack.c.b16 %v276, %v275
      %v280 = vpack.c.b16 %v278, %v277
      %vm283 = vcmask 261120
      %v285 = vsel %vm283, %v266, 0
      %287 = vmatpush.bf16.msra.mxu0 0
      %288 = vmatpush.bf16.msra.mxu0 0
      %289 = vmatpush.bf16.msra.mxu0 0
      %290 = vmatpush.bf16.msra.mxu0 0
      %291 = vmatpush.bf16.msra.mxu0 0
      %292 = vmatpush.bf16.msra.mxu0 0
      %293 = vmatpush.bf16.msra.mxu0 %v280
      %294 = vmatpush.bf16.msra.mxu0 %v279
      %295 = vmatmul.bf16.gmra.mxu0 %v285
      %v296 = vpop.f32.mrf.mxu0
      %v297 = vadd.f32 0.0, %v296
      %v298 = vpop.f32.mrf.mxu0
      %299 = vdwg.mxu0
      %v300 = vadd.f32 %v270, %v297
      %v301 = vmul.f32 %v300, 0.5
      %v302 = vtanh.pop %v301
      %v303 = vmul.f32 %v302, 0.5
      %v304 = vadd.f32 %v303, 0.5
      %305 = vrot.lane.b32.xlu0 %v279, 96
      %v306 = vpop.permute.xlu0 %305
      %307 = vrot.lane.b32.xlu0 %v280, 96
      %v308 = vpop.permute.xlu0 %307
      %311 = vmatpush.bf16.msra.mxu0 0
      %312 = vmatpush.bf16.msra.mxu0 0
      %313 = vmatpush.bf16.msra.mxu0 0
      %314 = vmatpush.bf16.msra.mxu0 0
      %315 = vmatpush.bf16.msra.mxu0 0
      %316 = vmatpush.bf16.msra.mxu0 0
      %317 = vmatpush.bf16.msra.mxu0 %v308
      %318 = vmatpush.bf16.msra.mxu0 %v306
      %319 = vmatmul.bf16.gmra.mxu0 %v285
      %v320 = vpop.f32.mrf.mxu0
      %v321 = vadd.f32 0.0, %v320
      %v322 = vpop.f32.mrf.mxu0
      %323 = vdwg.mxu0
      %325 = vrot.lane.b32.xlu0 %v321, 32
      %v326 = vpop.permute.xlu0 %325
      %v328 = vadd.f32 %v270, %v326
      %v329 = vmul.f32 %v328, 0.5
      %v330 = vtanh.pop %v329
      %v331 = vmul.f32 %v330, 0.5
      %v332 = vadd.f32 %v331, 0.5
      %333 = vrot.lane.b32.xlu0 %v279, 64
      %v334 = vpop.permute.xlu0 %333
      %335 = vrot.lane.b32.xlu0 %v280, 64
      %v336 = vpop.permute.xlu0 %335
      %339 = vmatpush.bf16.msra.mxu0 0
      %340 = vmatpush.bf16.msra.mxu0 0
      %341 = vmatpush.bf16.msra.mxu0 0
      %342 = vmatpush.bf16.msra.mxu0 0
      %343 = vmatpush.bf16.msra.mxu0 0
      %344 = vmatpush.bf16.msra.mxu0 0
      %345 = vmatpush.bf16.msra.mxu0 %v336
      %346 = vmatpush.bf16.msra.mxu0 %v334
      %347 = vmatmul.bf16.gmra.mxu0 %v285
      %v348 = vpop.f32.mrf.mxu0
      %v349 = vadd.f32 0.0, %v348
      %v350 = vpop.f32.mrf.mxu0
      %351 = vdwg.mxu0
      %353 = vrot.lane.b32.xlu0 %v349, 64
      %v354 = vpop.permute.xlu0 %353
      %v356 = vadd.f32 %v270, %v354
      %v357 = vtanh.pop %v356
      %359 = vrot.lane.b32.xlu0 %v264, 32
      %v360 = vpop.permute.xlu0 %359
      %v362 = vmul.f32 %v332, %v360
      %364 = vrot.lane.b32.xlu0 %v357, 64
      %v365 = vpop.permute.xlu0 %364
      %v367 = vmul.f32 %v304, %v365
      %369 = vrot.lane.b32.xlu0 %v367, 32
      %v370 = vpop.permute.xlu0 %369
      %v372 = vadd.f32 %v362, %v370
      %373 = vrot.lane.b32.xlu0 %v279, 32
      %v374 = vpop.permute.xlu0 %373
      %375 = vrot.lane.b32.xlu0 %v280, 32
      %v376 = vpop.permute.xlu0 %375
      %379 = vmatpush.bf16.msra.mxu0 0
      %380 = vmatpush.bf16.msra.mxu0 0
      %381 = vmatpush.bf16.msra.mxu0 0
      %382 = vmatpush.bf16.msra.mxu0 0
      %383 = vmatpush.bf16.msra.mxu0 0
      %384 = vmatpush.bf16.msra.mxu0 0
      %385 = vmatpush.bf16.msra.mxu0 %v376
      %386 = vmatpush.bf16.msra.mxu0 %v374
      %387 = vmatmul.bf16.gmra.mxu0 %v285
      %v388 = vpop.f32.mrf.mxu0
      %v389 = vadd.f32 0.0, %v388
      %v390 = vpop.f32.mrf.mxu0
      %391 = vdwg.mxu0
      %393 = vrot.lane.b32.xlu0 %v389, 96
      %v394 = vpop.permute.xlu0 %393
      %v396 = vadd.f32 %v270, %v394
      %v397 = vmul.f32 %v396, 0.5
      %v398 = vtanh.pop %v397
      %v399 = vmul.f32 %v398, 0.5
      %v400 = vadd.f32 %v399, 0.5
      %v401 = vtanh.pop %v372
      %403 = vrot.lane.b32.xlu0 %v401, 64
      %v404 = vpop.permute.xlu0 %403
      %v406 = vmul.f32 %v400, %v404
      %v407 = vpack.c.bf16 %v406, %v406
      %409 = vrot.lane.b32.xlu0 %v407, 32
      %v410 = vpop.permute.xlu0 %409
      %s412 = smul.addr %s265, 4
      %s413 = scalar_lea.vmem %s245, %s412
      %vm414 = vcmask 257024
      %415 = vst.msk [vmem:[%s413] sm:$0xf] %vm414, %v410
      %s416 = smul.u32 %s17, 5
      %s417 = sadd.s32 %s416, 1
      %s418 = smul.addr %s417, 4
      %s419 = scalar_lea.vmem %s222, %s418
      %v420 = vld [vmem:[%s419] sm:$0xf]
      %v421 = vunpack.c.l.bf16 %v420
      %v422 = vunpack.c.l.b16 %v407
      %v423 = vpack.c.b16 %v422, %v422
      %424 = vrot.lane.b32.xlu0 %v423, 32
      %v425 = vpop.permute.xlu0 %424
      %v427 = vsel %vm283, %v425, 0
      %429 = vmatpush.bf16.msra.mxu0 0
      %430 = vmatpush.bf16.msra.mxu0 0
      %431 = vmatpush.bf16.msra.mxu0 0
      %432 = vmatpush.bf16.msra.mxu0 0
      %433 = vmatpush.bf16.msra.mxu0 0
      %434 = vmatpush.bf16.msra.mxu0 0
      %435 = vmatpush.bf16.msra.mxu0 %v280
      %436 = vmatpush.bf16.msra.mxu0 %v279
      %437 = vmatmul.bf16.gmra.mxu0 %v427
      %v438 = vpop.f32.mrf.mxu0
      %v439 = vadd.f32 0.0, %v438
      %v440 = vpop.f32.mrf.mxu0
      %441 = vdwg.mxu0
      %v442 = vadd.f32 %v421, %v439
      %v443 = vmul.f32 %v442, 0.5
      %v444 = vtanh.pop %v443
      %v445 = vmul.f32 %v444, 0.5
      %v446 = vadd.f32 %v445, 0.5
      %447 = vmatpush.bf16.msra.mxu0 0
      %448 = vmatpush.bf16.msra.mxu0 0
      %449 = vmatpush.bf16.msra.mxu0 0
      %450 = vmatpush.bf16.msra.mxu0 0
      %451 = vmatpush.bf16.msra.mxu0 0
      %452 = vmatpush.bf16.msra.mxu0 0
      %453 = vmatpush.bf16.msra.mxu0 %v308
      %454 = vmatpush.bf16.msra.mxu0 %v306
      %455 = vmatmul.bf16.gmra.mxu0 %v427
      %v456 = vpop.f32.mrf.mxu0
      %v457 = vadd.f32 0.0, %v456
      %v458 = vpop.f32.mrf.mxu0
      %459 = vdwg.mxu0
      %461 = vrot.lane.b32.xlu0 %v457, 32
      %v462 = vpop.permute.xlu0 %461
      %v464 = vadd.f32 %v421, %v462
      %v465 = vmul.f32 %v464, 0.5
      %v466 = vtanh.pop %v465
      %v467 = vmul.f32 %v466, 0.5
      %v468 = vadd.f32 %v467, 0.5
      %469 = vmatpush.bf16.msra.mxu0 0
      %470 = vmatpush.bf16.msra.mxu0 0
      %471 = vmatpush.bf16.msra.mxu0 0
      %472 = vmatpush.bf16.msra.mxu0 0
      %473 = vmatpush.bf16.msra.mxu0 0
      %474 = vmatpush.bf16.msra.mxu0 0
      %475 = vmatpush.bf16.msra.mxu0 %v336
      %476 = vmatpush.bf16.msra.mxu0 %v334
      %477 = vmatmul.bf16.gmra.mxu0 %v427
      %v478 = vpop.f32.mrf.mxu0
      %v479 = vadd.f32 0.0, %v478
      %v480 = vpop.f32.mrf.mxu0
      %481 = vdwg.mxu0
      %483 = vrot.lane.b32.xlu0 %v479, 64
      %v484 = vpop.permute.xlu0 %483
      %v486 = vadd.f32 %v421, %v484
      %v487 = vtanh.pop %v486
      %v488 = vmul.f32 %v468, %v372
      %490 = vrot.lane.b32.xlu0 %v487, 64
      %v491 = vpop.permute.xlu0 %490
      %v493 = vmul.f32 %v446, %v491
      %495 = vrot.lane.b32.xlu0 %v493, 32
      %v496 = vpop.permute.xlu0 %495
      %v498 = vadd.f32 %v488, %v496
      %499 = vmatpush.bf16.msra.mxu0 0
      %500 = vmatpush.bf16.msra.mxu0 0
      %501 = vmatpush.bf16.msra.mxu0 0
      %502 = vmatpush.bf16.msra.mxu0 0
      %503 = vmatpush.bf16.msra.mxu0 0
      %504 = vmatpush.bf16.msra.mxu0 0
      %505 = vmatpush.bf16.msra.mxu0 %v376
      %506 = vmatpush.bf16.msra.mxu0 %v374
      %507 = vmatmul.bf16.gmra.mxu0 %v427
      %v508 = vpop.f32.mrf.mxu0
      %v509 = vadd.f32 0.0, %v508
      %v510 = vpop.f32.mrf.mxu0
      %511 = vdwg.mxu0
      %513 = vrot.lane.b32.xlu0 %v509, 96
      %v514 = vpop.permute.xlu0 %513
      %v516 = vadd.f32 %v421, %v514
      %v517 = vmul.f32 %v516, 0.5
      %v518 = vtanh.pop %v517
      %v519 = vmul.f32 %v518, 0.5
      %v520 = vadd.f32 %v519, 0.5
      %v521 = vtanh.pop %v498
      %523 = vrot.lane.b32.xlu0 %v521, 64
      %v524 = vpop.permute.xlu0 %523
      %v526 = vmul.f32 %v520, %v524
      %v527 = vpack.c.bf16 %v526, %v526
      %529 = vrot.lane.b32.xlu0 %v527, 32
      %v530 = vpop.permute.xlu0 %529
      %s532 = smul.addr %s417, 4
      %s533 = scalar_lea.vmem %s245, %s532
      %534 = vst.msk [vmem:[%s533] sm:$0xf] %vm414, %v530
      %s535 = smul.u32 %s17, 3
      %s536 = sadd.s32 %s535, 2
      %s537 = smul.addr %s536, 4
      %s538 = scalar_lea.vmem %s222, %s537
      %v539 = vld [vmem:[%s538] sm:$0xf]
      %v540 = vunpack.c.l.bf16 %v539
      %v541 = vunpack.c.l.b16 %v527
      %v542 = vpack.c.b16 %v541, %v541
      %543 = vrot.lane.b32.xlu0 %v542, 32
      %v544 = vpop.permute.xlu0 %543
      %v546 = vsel %vm283, %v544, 0
      %548 = vmatpush.bf16.msra.mxu0 0
      %549 = vmatpush.bf16.msra.mxu0 0
      %550 = vmatpush.bf16.msra.mxu0 0
      %551 = vmatpush.bf16.msra.mxu0 0
      %552 = vmatpush.bf16.msra.mxu0 0
      %553 = vmatpush.bf16.msra.mxu0 0
      %554 = vmatpush.bf16.msra.mxu0 %v280
      %555 = vmatpush.bf16.msra.mxu0 %v279
      %556 = vmatmul.bf16.gmra.mxu0 %v546
      %v557 = vpop.f32.mrf.mxu0
      %v558 = vadd.f32 0.0, %v557
      %v559 = vpop.f32.mrf.mxu0
      %560 = vdwg.mxu0
      %v561 = vadd.f32 %v540, %v558
      %v562 = vmul.f32 %v561, 0.5
      %v563 = vtanh.pop %v562
      %v564 = vmul.f32 %v563, 0.5
      %v565 = vadd.f32 %v564, 0.5
      %566 = vmatpush.bf16.msra.mxu0 0
      %567 = vmatpush.bf16.msra.mxu0 0
      %568 = vmatpush.bf16.msra.mxu0 0
      %569 = vmatpush.bf16.msra.mxu0 0
      %570 = vmatpush.bf16.msra.mxu0 0
      %571 = vmatpush.bf16.msra.mxu0 0
      %572 = vmatpush.bf16.msra.mxu0 %v308
      %573 = vmatpush.bf16.msra.mxu0 %v306
      %574 = vmatmul.bf16.gmra.mxu0 %v546
      %v575 = vpop.f32.mrf.mxu0
      %v576 = vadd.f32 0.0, %v575
      %v577 = vpop.f32.mrf.mxu0
      %578 = vdwg.mxu0
      %580 = vrot.lane.b32.xlu0 %v576, 32
      %v581 = vpop.permute.xlu0 %580
      %v583 = vadd.f32 %v540, %v581
      %v584 = vmul.f32 %v583, 0.5
      %v585 = vtanh.pop %v584
      %v586 = vmul.f32 %v585, 0.5
      %v587 = vadd.f32 %v586, 0.5
      %588 = vmatpush.bf16.msra.mxu0 0
      %589 = vmatpush.bf16.msra.mxu0 0
      %590 = vmatpush.bf16.msra.mxu0 0
      %591 = vmatpush.bf16.msra.mxu0 0
      %592 = vmatpush.bf16.msra.mxu0 0
      %593 = vmatpush.bf16.msra.mxu0 0
      %594 = vmatpush.bf16.msra.mxu0 %v336
      %595 = vmatpush.bf16.msra.mxu0 %v334
      %596 = vmatmul.bf16.gmra.mxu0 %v546
      %v597 = vpop.f32.mrf.mxu0
      %v598 = vadd.f32 0.0, %v597
      %v599 = vpop.f32.mrf.mxu0
      %600 = vdwg.mxu0
      %602 = vrot.lane.b32.xlu0 %v598, 64
      %v603 = vpop.permute.xlu0 %602
      %v605 = vadd.f32 %v540, %v603
      %v606 = vtanh.pop %v605
      %v607 = vmul.f32 %v587, %v498
      %609 = vrot.lane.b32.xlu0 %v606, 64
      %v610 = vpop.permute.xlu0 %609
      %v612 = vmul.f32 %v565, %v610
      %614 = vrot.lane.b32.xlu0 %v612, 32
      %v615 = vpop.permute.xlu0 %614
      %v617 = vadd.f32 %v607, %v615
      %618 = vmatpush.bf16.msra.mxu0 0
      %619 = vmatpush.bf16.msra.mxu0 0
      %620 = vmatpush.bf16.msra.mxu0 0
      %621 = vmatpush.bf16.msra.mxu0 0
      %622 = vmatpush.bf16.msra.mxu0 0
      %623 = vmatpush.bf16.msra.mxu0 0
      %624 = vmatpush.bf16.msra.mxu0 %v376
      %625 = vmatpush.bf16.msra.mxu0 %v374
      %626 = vmatmul.bf16.gmra.mxu0 %v546
      %v627 = vpop.f32.mrf.mxu0
      %v628 = vadd.f32 0.0, %v627
      %v629 = vpop.f32.mrf.mxu0
      %630 = vdwg.mxu0
      %632 = vrot.lane.b32.xlu0 %v628, 96
      %v633 = vpop.permute.xlu0 %632
      %v635 = vadd.f32 %v540, %v633
      %v636 = vmul.f32 %v635, 0.5
      %v637 = vtanh.pop %v636
      %v638 = vmul.f32 %v637, 0.5
      %v639 = vadd.f32 %v638, 0.5
      %v640 = vtanh.pop %v617
      %642 = vrot.lane.b32.xlu0 %v640, 64
      %v643 = vpop.permute.xlu0 %642
      %v645 = vmul.f32 %v639, %v643
      %v646 = vpack.c.bf16 %v645, %v645
      %648 = vrot.lane.b32.xlu0 %v646, 32
      %v649 = vpop.permute.xlu0 %648
      %s651 = smul.addr %s536, 4
      %s652 = scalar_lea.vmem %s245, %s651
      %653 = vst.msk [vmem:[%s652] sm:$0xf] %vm414, %v649
      %s654 = sadd.s32 %s17, 3
      %s655 = smul.addr %s654, 4
      %s656 = scalar_lea.vmem %s222, %s655
      %v657 = vld [vmem:[%s656] sm:$0xf]
      %v658 = vunpack.c.l.bf16 %v657
      %v659 = vunpack.c.l.b16 %v646
      %v660 = vpack.c.b16 %v659, %v659
      %661 = vrot.lane.b32.xlu0 %v660, 32
      %v662 = vpop.permute.xlu0 %661
      %v664 = vsel %vm283, %v662, 0
      %666 = vmatpush.bf16.msra.mxu0 0
      %667 = vmatpush.bf16.msra.mxu0 0
      %668 = vmatpush.bf16.msra.mxu0 0
      %669 = vmatpush.bf16.msra.mxu0 0
      %670 = vmatpush.bf16.msra.mxu0 0
      %671 = vmatpush.bf16.msra.mxu0 0
      %672 = vmatpush.bf16.msra.mxu0 %v280
      %673 = vmatpush.bf16.msra.mxu0 %v279
      %674 = vmatmul.bf16.gmra.mxu0 %v664
      %v675 = vpop.f32.mrf.mxu0
      %v676 = vadd.f32 0.0, %v675
      %v677 = vpop.f32.mrf.mxu0
      %678 = vdwg.mxu0
      %v679 = vadd.f32 %v658, %v676
      %v680 = vmul.f32 %v679, 0.5
      %v681 = vtanh.pop %v680
      %v682 = vmul.f32 %v681, 0.5
      %v683 = vadd.f32 %v682, 0.5
      %684 = vmatpush.bf16.msra.mxu0 0
      %685 = vmatpush.bf16.msra.mxu0 0
      %686 = vmatpush.bf16.msra.mxu0 0
      %687 = vmatpush.bf16.msra.mxu0 0
      %688 = vmatpush.bf16.msra.mxu0 0
      %689 = vmatpush.bf16.msra.mxu0 0
      %690 = vmatpush.bf16.msra.mxu0 %v308
      %691 = vmatpush.bf16.msra.mxu0 %v306
      %692 = vmatmul.bf16.gmra.mxu0 %v664
      %v693 = vpop.f32.mrf.mxu0
      %v694 = vadd.f32 0.0, %v693
      %v695 = vpop.f32.mrf.mxu0
      %696 = vdwg.mxu0
      %698 = vrot.lane.b32.xlu0 %v694, 32
      %v699 = vpop.permute.xlu0 %698
      %v701 = vadd.f32 %v658, %v699
      %v702 = vmul.f32 %v701, 0.5
      %v703 = vtanh.pop %v702
      %v704 = vmul.f32 %v703, 0.5
      %v705 = vadd.f32 %v704, 0.5
      %706 = vmatpush.bf16.msra.mxu0 0
      %707 = vmatpush.bf16.msra.mxu0 0
      %708 = vmatpush.bf16.msra.mxu0 0
      %709 = vmatpush.bf16.msra.mxu0 0
      %710 = vmatpush.bf16.msra.mxu0 0
      %711 = vmatpush.bf16.msra.mxu0 0
      %712 = vmatpush.bf16.msra.mxu0 %v336
      %713 = vmatpush.bf16.msra.mxu0 %v334
      %714 = vmatmul.bf16.gmra.mxu0 %v664
      %v715 = vpop.f32.mrf.mxu0
      %v716 = vadd.f32 0.0, %v715
      %v717 = vpop.f32.mrf.mxu0
      %718 = vdwg.mxu0
      %720 = vrot.lane.b32.xlu0 %v716, 64
      %v721 = vpop.permute.xlu0 %720
      %v723 = vadd.f32 %v658, %v721
      %v724 = vtanh.pop %v723
      %v725 = vmul.f32 %v705, %v617
      %727 = vrot.lane.b32.xlu0 %v724, 64
      %v728 = vpop.permute.xlu0 %727
      %v730 = vmul.f32 %v683, %v728
      %732 = vrot.lane.b32.xlu0 %v730, 32
      %v733 = vpop.permute.xlu0 %732
      %v735 = vadd.f32 %v725, %v733
      %736 = vmatpush.bf16.msra.mxu0 0
      %737 = vmatpush.bf16.msra.mxu0 0
      %738 = vmatpush.bf16.msra.mxu0 0
      %739 = vmatpush.bf16.msra.mxu0 0
      %740 = vmatpush.bf16.msra.mxu0 0
      %741 = vmatpush.bf16.msra.mxu0 0
      %742 = vmatpush.bf16.msra.mxu0 %v376
      %743 = vmatpush.bf16.msra.mxu0 %v374
      %744 = vmatmul.bf16.gmra.mxu0 %v664
      %v745 = vpop.f32.mrf.mxu0
      %v746 = vadd.f32 0.0, %v745
      %v747 = vpop.f32.mrf.mxu0
      %748 = vdwg.mxu0
      %750 = vrot.lane.b32.xlu0 %v746, 96
      %v751 = vpop.permute.xlu0 %750
      %v753 = vadd.f32 %v658, %v751
      %v754 = vmul.f32 %v753, 0.5
      %v755 = vtanh.pop %v754
      %v756 = vmul.f32 %v755, 0.5
      %v757 = vadd.f32 %v756, 0.5
      %v758 = vtanh.pop %v735
      %760 = vrot.lane.b32.xlu0 %v758, 64
      %v761 = vpop.permute.xlu0 %760
      %v763 = vmul.f32 %v757, %v761
      %v764 = vpack.c.bf16 %v763, %v763
      %766 = vrot.lane.b32.xlu0 %v764, 32
      %v767 = vpop.permute.xlu0 %766
      %s769 = smul.addr %s654, 4
      %s770 = scalar_lea.vmem %s245, %s769
      %771 = vst.msk [vmem:[%s770] sm:$0xf] %vm414, %v767
      %s772 = ssub.s32 4, %s17
      %s773 = smul.addr %s772, 4
      %s774 = scalar_lea.vmem %s222, %s773
      %v775 = vld [vmem:[%s774] sm:$0xf]
      %v776 = vunpack.c.l.bf16 %v775
      %v777 = vunpack.c.l.b16 %v764
      %v778 = vpack.c.b16 %v777, %v777
      %779 = vrot.lane.b32.xlu0 %v778, 32
      %v780 = vpop.permute.xlu0 %779
      %v782 = vsel %vm283, %v780, 0
      %784 = vmatpush.bf16.msra.mxu0 0
      %785 = vmatpush.bf16.msra.mxu0 0
      %786 = vmatpush.bf16.msra.mxu0 0
      %787 = vmatpush.bf16.msra.mxu0 0
      %788 = vmatpush.bf16.msra.mxu0 0
      %789 = vmatpush.bf16.msra.mxu0 0
      %790 = vmatpush.bf16.msra.mxu0 %v280
      %791 = vmatpush.bf16.msra.mxu0 %v279
      %792 = vmatmul.bf16.gmra.mxu0 %v782
      %v793 = vpop.f32.mrf.mxu0
      %v794 = vadd.f32 0.0, %v793
      %v795 = vpop.f32.mrf.mxu0
      %796 = vdwg.mxu0
      %v797 = vadd.f32 %v776, %v794
      %v798 = vmul.f32 %v797, 0.5
      %v799 = vtanh.pop %v798
      %v800 = vmul.f32 %v799, 0.5
      %v801 = vadd.f32 %v800, 0.5
      %802 = vmatpush.bf16.msra.mxu0 0
      %803 = vmatpush.bf16.msra.mxu0 0
      %804 = vmatpush.bf16.msra.mxu0 0
      %805 = vmatpush.bf16.msra.mxu0 0
      %806 = vmatpush.bf16.msra.mxu0 0
      %807 = vmatpush.bf16.msra.mxu0 0
      %808 = vmatpush.bf16.msra.mxu0 %v308
      %809 = vmatpush.bf16.msra.mxu0 %v306
      %810 = vmatmul.bf16.gmra.mxu0 %v782
      %v811 = vpop.f32.mrf.mxu0
      %v812 = vadd.f32 0.0, %v811
      %v813 = vpop.f32.mrf.mxu0
      %814 = vdwg.mxu0
      %816 = vrot.lane.b32.xlu0 %v812, 32
      %v817 = vpop.permute.xlu0 %816
      %v819 = vadd.f32 %v776, %v817
      %v820 = vmul.f32 %v819, 0.5
      %v821 = vtanh.pop %v820
      %v822 = vmul.f32 %v821, 0.5
      %v823 = vadd.f32 %v822, 0.5
      %824 = vmatpush.bf16.msra.mxu0 0
      %825 = vmatpush.bf16.msra.mxu0 0
      %826 = vmatpush.bf16.msra.mxu0 0
      %827 = vmatpush.bf16.msra.mxu0 0
      %828 = vmatpush.bf16.msra.mxu0 0
      %829 = vmatpush.bf16.msra.mxu0 0
      %830 = vmatpush.bf16.msra.mxu0 %v336
      %831 = vmatpush.bf16.msra.mxu0 %v334
      %832 = vmatmul.bf16.gmra.mxu0 %v782
      %v833 = vpop.f32.mrf.mxu0
      %v834 = vadd.f32 0.0, %v833
      %v835 = vpop.f32.mrf.mxu0
      %836 = vdwg.mxu0
      %838 = vrot.lane.b32.xlu0 %v834, 64
      %v839 = vpop.permute.xlu0 %838
      %v841 = vadd.f32 %v776, %v839
      %v842 = vtanh.pop %v841
      %v843 = vmul.f32 %v823, %v735
      %845 = vrot.lane.b32.xlu0 %v842, 64
      %v846 = vpop.permute.xlu0 %845
      %v848 = vmul.f32 %v801, %v846
      %850 = vrot.lane.b32.xlu0 %v848, 32
      %v851 = vpop.permute.xlu0 %850
      %v853 = vadd.f32 %v843, %v851
      %854 = vmatpush.bf16.msra.mxu0 0
      %855 = vmatpush.bf16.msra.mxu0 0
      %856 = vmatpush.bf16.msra.mxu0 0
      %857 = vmatpush.bf16.msra.mxu0 0
      %858 = vmatpush.bf16.msra.mxu0 0
      %859 = vmatpush.bf16.msra.mxu0 0
      %860 = vmatpush.bf16.msra.mxu0 %v376
      %861 = vmatpush.bf16.msra.mxu0 %v374
      %862 = vmatmul.bf16.gmra.mxu0 %v782
      %v863 = vpop.f32.mrf.mxu0
      %v864 = vadd.f32 0.0, %v863
      %v865 = vpop.f32.mrf.mxu0
      %866 = vdwg.mxu0
      %868 = vrot.lane.b32.xlu0 %v864, 96
      %v869 = vpop.permute.xlu0 %868
      %v871 = vadd.f32 %v776, %v869
      %v872 = vmul.f32 %v871, 0.5
      %v873 = vtanh.pop %v872
      %v874 = vmul.f32 %v873, 0.5
      %v875 = vadd.f32 %v874, 0.5
      %v876 = vtanh.pop %v853
      %878 = vrot.lane.b32.xlu0 %v876, 64
      %v879 = vpop.permute.xlu0 %878
      %v881 = vmul.f32 %v875, %v879
      %v882 = vpack.c.bf16 %v881, %v881
      %884 = vrot.lane.b32.xlu0 %v882, 32
      %v885 = vpop.permute.xlu0 %884
      %s887 = smul.addr %s772, 4
      %s888 = scalar_lea.vmem %s245, %s887
      %889 = vst.msk [vmem:[%s888] sm:$0xf] %vm414, %v885
      %s890 = smul.u32 %s17, 4294967293
      %s891 = sadd.s32 %s890, 5
      %s892 = smul.addr %s891, 4
      %s893 = scalar_lea.vmem %s222, %s892
      %v894 = vld [vmem:[%s893] sm:$0xf]
      %v895 = vunpack.c.l.bf16 %v894
      %v896 = vunpack.c.l.b16 %v882
      %v897 = vpack.c.b16 %v896, %v896
      %898 = vrot.lane.b32.xlu0 %v897, 32
      %v899 = vpop.permute.xlu0 %898
      %v901 = vsel %vm283, %v899, 0
      %903 = vmatpush.bf16.msra.mxu0 0
      %904 = vmatpush.bf16.msra.mxu0 0
      %905 = vmatpush.bf16.msra.mxu0 0
      %906 = vmatpush.bf16.msra.mxu0 0
      %907 = vmatpush.bf16.msra.mxu0 0
      %908 = vmatpush.bf16.msra.mxu0 0
      %909 = vmatpush.bf16.msra.mxu0 %v280
      %910 = vmatpush.bf16.msra.mxu0 %v279
      %911 = vmatmul.bf16.gmra.mxu0 %v901
      %v912 = vpop.f32.mrf.mxu0
      %v913 = vadd.f32 0.0, %v912
      %v914 = vpop.f32.mrf.mxu0
      %915 = vdwg.mxu0
      %v916 = vadd.f32 %v895, %v913
      %v917 = vmul.f32 %v916, 0.5
      %v918 = vtanh.pop %v917
      %v919 = vmul.f32 %v918, 0.5
      %v920 = vadd.f32 %v919, 0.5
      %921 = vmatpush.bf16.msra.mxu0 0
      %922 = vmatpush.bf16.msra.mxu0 0
      %923 = vmatpush.bf16.msra.mxu0 0
      %924 = vmatpush.bf16.msra.mxu0 0
      %925 = vmatpush.bf16.msra.mxu0 0
      %926 = vmatpush.bf16.msra.mxu0 0
      %927 = vmatpush.bf16.msra.mxu0 %v308
      %928 = vmatpush.bf16.msra.mxu0 %v306
      %929 = vmatmul.bf16.gmra.mxu0 %v901
      %v930 = vpop.f32.mrf.mxu0
      %v931 = vadd.f32 0.0, %v930
      %v932 = vpop.f32.mrf.mxu0
      %933 = vdwg.mxu0
      %935 = vrot.lane.b32.xlu0 %v931, 32
      %v936 = vpop.permute.xlu0 %935
      %v938 = vadd.f32 %v895, %v936
      %v939 = vmul.f32 %v938, 0.5
      %v940 = vtanh.pop %v939
      %v941 = vmul.f32 %v940, 0.5
      %v942 = vadd.f32 %v941, 0.5
      %943 = vmatpush.bf16.msra.mxu0 0
      %944 = vmatpush.bf16.msra.mxu0 0
      %945 = vmatpush.bf16.msra.mxu0 0
      %946 = vmatpush.bf16.msra.mxu0 0
      %947 = vmatpush.bf16.msra.mxu0 0
      %948 = vmatpush.bf16.msra.mxu0 0
      %949 = vmatpush.bf16.msra.mxu0 %v336
      %950 = vmatpush.bf16.msra.mxu0 %v334
      %951 = vmatmul.bf16.gmra.mxu0 %v901
      %v952 = vpop.f32.mrf.mxu0
      %v953 = vadd.f32 0.0, %v952
      %v954 = vpop.f32.mrf.mxu0
      %955 = vdwg.mxu0
      %957 = vrot.lane.b32.xlu0 %v953, 64
      %v958 = vpop.permute.xlu0 %957
      %v960 = vadd.f32 %v895, %v958
      %v961 = vtanh.pop %v960
      %v962 = vmul.f32 %v942, %v853
      %964 = vrot.lane.b32.xlu0 %v961, 64
      %v965 = vpop.permute.xlu0 %964
      %v967 = vmul.f32 %v920, %v965
      %969 = vrot.lane.b32.xlu0 %v967, 32
      %v970 = vpop.permute.xlu0 %969
      %v972 = vadd.f32 %v962, %v970
      %973 = vmatpush.bf16.msra.mxu0 0
      %974 = vmatpush.bf16.msra.mxu0 0
      %975 = vmatpush.bf16.msra.mxu0 0
      %976 = vmatpush.bf16.msra.mxu0 0
      %977 = vmatpush.bf16.msra.mxu0 0
      %978 = vmatpush.bf16.msra.mxu0 0
      %979 = vmatpush.bf16.msra.mxu0 %v376
      %980 = vmatpush.bf16.msra.mxu0 %v374
      %981 = vmatmul.bf16.gmra.mxu0 %v901
      %v982 = vpop.f32.mrf.mxu0
      %v983 = vadd.f32 0.0, %v982
      %v984 = vpop.f32.mrf.mxu0
      %985 = vdwg.mxu0
      %987 = vrot.lane.b32.xlu0 %v983, 96
      %v988 = vpop.permute.xlu0 %987
      %v990 = vadd.f32 %v895, %v988
      %v991 = vmul.f32 %v990, 0.5
      %v992 = vtanh.pop %v991
      %v993 = vmul.f32 %v992, 0.5
      %v994 = vadd.f32 %v993, 0.5
      %v995 = vtanh.pop %v972
      %997 = vrot.lane.b32.xlu0 %v995, 64
      %v998 = vpop.permute.xlu0 %997
      %v1000 = vmul.f32 %v994, %v998
      %v1001 = vpack.c.bf16 %v1000, %v1000
      %1003 = vrot.lane.b32.xlu0 %v1001, 32
      %v1004 = vpop.permute.xlu0 %1003
      %s1006 = smul.addr %s891, 4
      %s1007 = scalar_lea.vmem %s245, %s1006
      %1008 = vst.msk [vmem:[%s1007] sm:$0xf] %vm414, %v1004
      %s1009 = smul.u32 %s17, 4294967291
      %s1010 = sadd.s32 %s1009, 6
      %s1011 = smul.addr %s1010, 4
      %s1012 = scalar_lea.vmem %s222, %s1011
      %v1013 = vld [vmem:[%s1012] sm:$0xf]
      %v1014 = vunpack.c.l.bf16 %v1013
      %v1015 = vunpack.c.l.b16 %v1001
      %v1016 = vpack.c.b16 %v1015, %v1015
      %1017 = vrot.lane.b32.xlu0 %v1016, 32
      %v1018 = vpop.permute.xlu0 %1017
      %v1020 = vsel %vm283, %v1018, 0
      %1022 = vmatpush.bf16.msra.mxu0 0
      %1023 = vmatpush.bf16.msra.mxu0 0
      %1024 = vmatpush.bf16.msra.mxu0 0
      %1025 = vmatpush.bf16.msra.mxu0 0
      %1026 = vmatpush.bf16.msra.mxu0 0
      %1027 = vmatpush.bf16.msra.mxu0 0
      %1028 = vmatpush.bf16.msra.mxu0 %v280
      %1029 = vmatpush.bf16.msra.mxu0 %v279
      %1030 = vmatmul.bf16.gmra.mxu0 %v1020
      %v1031 = vpop.f32.mrf.mxu0
      %v1032 = vadd.f32 0.0, %v1031
      %v1033 = vpop.f32.mrf.mxu0
      %1034 = vdwg.mxu0
      %v1035 = vadd.f32 %v1014, %v1032
      %v1036 = vmul.f32 %v1035, 0.5
      %v1037 = vtanh.pop %v1036
      %v1038 = vmul.f32 %v1037, 0.5
      %v1039 = vadd.f32 %v1038, 0.5
      %1040 = vmatpush.bf16.msra.mxu0 0
      %1041 = vmatpush.bf16.msra.mxu0 0
      %1042 = vmatpush.bf16.msra.mxu0 0
      %1043 = vmatpush.bf16.msra.mxu0 0
      %1044 = vmatpush.bf16.msra.mxu0 0
      %1045 = vmatpush.bf16.msra.mxu0 0
      %1046 = vmatpush.bf16.msra.mxu0 %v308
      %1047 = vmatpush.bf16.msra.mxu0 %v306
      %1048 = vmatmul.bf16.gmra.mxu0 %v1020
      %v1049 = vpop.f32.mrf.mxu0
      %v1050 = vadd.f32 0.0, %v1049
      %v1051 = vpop.f32.mrf.mxu0
      %1052 = vdwg.mxu0
      %1054 = vrot.lane.b32.xlu0 %v1050, 32
      %v1055 = vpop.permute.xlu0 %1054
      %v1057 = vadd.f32 %v1014, %v1055
      %v1058 = vmul.f32 %v1057, 0.5
      %v1059 = vtanh.pop %v1058
      %v1060 = vmul.f32 %v1059, 0.5
      %v1061 = vadd.f32 %v1060, 0.5
      %1062 = vmatpush.bf16.msra.mxu0 0
      %1063 = vmatpush.bf16.msra.mxu0 0
      %1064 = vmatpush.bf16.msra.mxu0 0
      %1065 = vmatpush.bf16.msra.mxu0 0
      %1066 = vmatpush.bf16.msra.mxu0 0
      %1067 = vmatpush.bf16.msra.mxu0 0
      %1068 = vmatpush.bf16.msra.mxu0 %v336
      %1069 = vmatpush.bf16.msra.mxu0 %v334
      %1070 = vmatmul.bf16.gmra.mxu0 %v1020
      %v1071 = vpop.f32.mrf.mxu0
      %v1072 = vadd.f32 0.0, %v1071
      %v1073 = vpop.f32.mrf.mxu0
      %1074 = vdwg.mxu0
      %1076 = vrot.lane.b32.xlu0 %v1072, 64
      %v1077 = vpop.permute.xlu0 %1076
      %v1079 = vadd.f32 %v1014, %v1077
      %v1080 = vtanh.pop %v1079
      %v1081 = vmul.f32 %v1061, %v972
      %1083 = vrot.lane.b32.xlu0 %v1080, 64
      %v1084 = vpop.permute.xlu0 %1083
      %v1086 = vmul.f32 %v1039, %v1084
      %1088 = vrot.lane.b32.xlu0 %v1086, 32
      %v1089 = vpop.permute.xlu0 %1088
      %v1091 = vadd.f32 %v1081, %v1089
      %1092 = vmatpush.bf16.msra.mxu0 0
      %1093 = vmatpush.bf16.msra.mxu0 0
      %1094 = vmatpush.bf16.msra.mxu0 0
      %1095 = vmatpush.bf16.msra.mxu0 0
      %1096 = vmatpush.bf16.msra.mxu0 0
      %1097 = vmatpush.bf16.msra.mxu0 0
      %1098 = vmatpush.bf16.msra.mxu0 %v376
      %1099 = vmatpush.bf16.msra.mxu0 %v374
      %1100 = vmatmul.bf16.gmra.mxu0 %v1020
      %v1101 = vpop.f32.mrf.mxu0
      %v1102 = vadd.f32 0.0, %v1101
      %v1103 = vpop.f32.mrf.mxu0
      %1104 = vdwg.mxu0
      %1106 = vrot.lane.b32.xlu0 %v1102, 96
      %v1107 = vpop.permute.xlu0 %1106
      %v1109 = vadd.f32 %v1014, %v1107
      %v1110 = vmul.f32 %v1109, 0.5
      %v1111 = vtanh.pop %v1110
      %v1112 = vmul.f32 %v1111, 0.5
      %v1113 = vadd.f32 %v1112, 0.5
      %v1114 = vtanh.pop %v1091
      %1116 = vrot.lane.b32.xlu0 %v1114, 64
      %v1117 = vpop.permute.xlu0 %1116
      %v1119 = vmul.f32 %v1113, %v1117
      %v1120 = vpack.c.bf16 %v1119, %v1119
      %1122 = vrot.lane.b32.xlu0 %v1120, 32
      %v1123 = vpop.permute.xlu0 %1122
      %s1125 = smul.addr %s1010, 4
      %s1126 = scalar_lea.vmem %s245, %s1125
      %1127 = vst.msk [vmem:[%s1126] sm:$0xf] %vm414, %v1123
      %s1128 = smul.u32 %s17, 4294967289
      %s1129 = sadd.s32 %s1128, 7
      %s1130 = smul.addr %s1129, 4
      %s1131 = scalar_lea.vmem %s222, %s1130
      %v1132 = vld [vmem:[%s1131] sm:$0xf]
      %v1133 = vunpack.c.l.bf16 %v1132
      %v1134 = vunpack.c.l.b16 %v1120
      %v1135 = vpack.c.b16 %v1134, %v1134
      %1136 = vrot.lane.b32.xlu0 %v1135, 32
      %v1137 = vpop.permute.xlu0 %1136
      %v1139 = vsel %vm283, %v1137, 0
      %1141 = vmatpush.bf16.msra.mxu0 0
      %1142 = vmatpush.bf16.msra.mxu0 0
      %1143 = vmatpush.bf16.msra.mxu0 0
      %1144 = vmatpush.bf16.msra.mxu0 0
      %1145 = vmatpush.bf16.msra.mxu0 0
      %1146 = vmatpush.bf16.msra.mxu0 0
      %1147 = vmatpush.bf16.msra.mxu0 %v280
      %1148 = vmatpush.bf16.msra.mxu0 %v279
      %1149 = vmatmul.bf16.gmra.mxu0 %v1139
      %v1150 = vpop.f32.mrf.mxu0
      %v1151 = vadd.f32 0.0, %v1150
      %v1152 = vpop.f32.mrf.mxu0
      %1153 = vdwg.mxu0
      %v1154 = vadd.f32 %v1133, %v1151
      %v1155 = vmul.f32 %v1154, 0.5
      %v1156 = vtanh.pop %v1155
      %v1157 = vmul.f32 %v1156, 0.5
      %v1158 = vadd.f32 %v1157, 0.5
      %1159 = vmatpush.bf16.msra.mxu0 0
      %1160 = vmatpush.bf16.msra.mxu0 0
      %1161 = vmatpush.bf16.msra.mxu0 0
      %1162 = vmatpush.bf16.msra.mxu0 0
      %1163 = vmatpush.bf16.msra.mxu0 0
      %1164 = vmatpush.bf16.msra.mxu0 0
      %1165 = vmatpush.bf16.msra.mxu0 %v308
      %1166 = vmatpush.bf16.msra.mxu0 %v306
      %1167 = vmatmul.bf16.gmra.mxu0 %v1139
      %v1168 = vpop.f32.mrf.mxu0
      %v1169 = vadd.f32 0.0, %v1168
      %v1170 = vpop.f32.mrf.mxu0
      %1171 = vdwg.mxu0
      %1173 = vrot.lane.b32.xlu0 %v1169, 32
      %v1174 = vpop.permute.xlu0 %1173
      %v1176 = vadd.f32 %v1133, %v1174
      %v1177 = vmul.f32 %v1176, 0.5
      %v1178 = vtanh.pop %v1177
      %v1179 = vmul.f32 %v1178, 0.5
      %v1180 = vadd.f32 %v1179, 0.5
      %1181 = vmatpush.bf16.msra.mxu0 0
      %1182 = vmatpush.bf16.msra.mxu0 0
      %1183 = vmatpush.bf16.msra.mxu0 0
      %1184 = vmatpush.bf16.msra.mxu0 0
      %1185 = vmatpush.bf16.msra.mxu0 0
      %1186 = vmatpush.bf16.msra.mxu0 0
      %1187 = vmatpush.bf16.msra.mxu0 %v336
      %1188 = vmatpush.bf16.msra.mxu0 %v334
      %1189 = vmatmul.bf16.gmra.mxu0 %v1139
      %v1190 = vpop.f32.mrf.mxu0
      %v1191 = vadd.f32 0.0, %v1190
      %v1192 = vpop.f32.mrf.mxu0
      %1193 = vdwg.mxu0
      %1195 = vrot.lane.b32.xlu0 %v1191, 64
      %v1196 = vpop.permute.xlu0 %1195
      %v1198 = vadd.f32 %v1133, %v1196
      %v1199 = vtanh.pop %v1198
      %v1200 = vmul.f32 %v1180, %v1091
      %1202 = vrot.lane.b32.xlu0 %v1199, 64
      %v1203 = vpop.permute.xlu0 %1202
      %v1205 = vmul.f32 %v1158, %v1203
      %1207 = vrot.lane.b32.xlu0 %v1205, 32
      %v1208 = vpop.permute.xlu0 %1207
      %v1210 = vadd.f32 %v1200, %v1208
      %1211 = vmatpush.bf16.msra.mxu0 0
      %1212 = vmatpush.bf16.msra.mxu0 0
      %1213 = vmatpush.bf16.msra.mxu0 0
      %1214 = vmatpush.bf16.msra.mxu0 0
      %1215 = vmatpush.bf16.msra.mxu0 0
      %1216 = vmatpush.bf16.msra.mxu0 0
      %1217 = vmatpush.bf16.msra.mxu0 %v376
      %1218 = vmatpush.bf16.msra.mxu0 %v374
      %1219 = vmatmul.bf16.gmra.mxu0 %v1139
      %v1220 = vpop.f32.mrf.mxu0
      %v1221 = vadd.f32 0.0, %v1220
      %v1222 = vpop.f32.mrf.mxu0
      %1223 = vdwg.mxu0
      %1225 = vrot.lane.b32.xlu0 %v1221, 96
      %v1226 = vpop.permute.xlu0 %1225
      %v1228 = vadd.f32 %v1133, %v1226
      %v1229 = vmul.f32 %v1228, 0.5
      %v1230 = vtanh.pop %v1229
      %v1231 = vmul.f32 %v1230, 0.5
      %v1232 = vadd.f32 %v1231, 0.5
      %v1233 = vtanh.pop %v1210
      %1235 = vrot.lane.b32.xlu0 %v1233, 64
      %v1236 = vpop.permute.xlu0 %1235
      %v1238 = vmul.f32 %v1232, %v1236
      %v1239 = vpack.c.bf16 %v1238, %v1238
      %1241 = vrot.lane.b32.xlu0 %v1239, 32
      %v1242 = vpop.permute.xlu0 %1241
      %s1244 = smul.addr %s1129, 4
      %s1245 = scalar_lea.vmem %s245, %s1244
      %1246 = vst.msk [vmem:[%s1245] sm:$0xf] %vm414, %v1242
      %1248 = vrot.lane.b32.xlu0 %v1238, 32
      %v1249 = vpop.permute.xlu0 %1248
      %1251 = vst.msk [vmem:[#allocation2] sm:$0xff] %vm283, %v1249
      %1253 = vrot.lane.b32.xlu0 %v1210, 96
      %v1254 = vpop.permute.xlu0 %1253
      %1256 = vst.msk [vmem:[#allocation3] sm:$0xff] %vm283, %v1254
      %s1257 = smul.u32 %s18, 2
      %s1258 = ssub.s32 0, %s1257
      %s1259 = smul.u32 %s17, %s1258
      %s1260 = sadd.s32 %s18, %s1259
      %s1261 = smul.u32 8, %s1260
      %p1262 = scmp.lt.s32.totalorder %s17, 1
      %s1263 = scalar_select %p1262, %s17, 1
      %p1264 = scmp.lt.s32.totalorder %s1261, 7
      %s1265 = scalar_select %p1264, %s1261, 7
      %s1266 = smul.addr %s1263, 8
      %s1267 = sadd.s32 %s1265, %s1266
      %s1268 = smul.addr %s1267, 4
      %s1269 = scalar_lea.vmem %s2, %s1268
      // Predicated region
      $region33: #{blstm2_forward.3} parent=27 // pred_check
        %p1270 = pneg %p115
      $region34: #{blstm2_forward.3} parent=27 // pred_check_branch
        %1272 = sbr.rel (%p1270) target = $region36
      $region35: #{blstm2_forward.3} parent=27 // pred_region
        %s1273 = smul.u32 %s18, 2
        %s1274 = ssub.s32 0, %s1273
        %s1275 = smul.u32 %s17, %s1274
        %s1276 = sadd.s32 %s18, %s1275
        %s1277 = smul.u32 8, %s1276
      $region36: #{blstm2_forward.3} parent=27 // pred_fallthru
        _
    $region28: #{blstm2_forward.3} parent=5 // pred_fallthru
      _
    %p1278 = scmp.le.s32.totalorder 2, %s8
    // Predicated region
    $region37: #{blstm2_forward.3} parent=5 // pred_check
      %p1279 = pneg %p1278
    $region38: #{blstm2_forward.3} parent=5 // pred_check_branch
      %1281 = sbr.rel (%p1279) target = $region40
    $region39: #{blstm2_forward.3} parent=5 // pred_region
      %s1282 = ssub.s32 %s8, 2
      // Predicated region
      $region41: #{blstm2_forward.3} parent=39 // pred_check
        %p1283 = pneg %p121
      $region42: #{blstm2_forward.3} parent=39 // pred_check_branch
        %1285 = sbr.rel (%p1283) target = $region44
      $region43: #{blstm2_forward.3} parent=39 // pred_region
        %s1286 = smul.u32 %s20, 2
        %s1287 = ssub.s32 0, %s1286
        %s1288 = smul.u32 %s19, %s1287
        %s1289 = sadd.s32 %s20, %s1288
        %s1290 = smul.u32 8, %s1289
        %p1291 = scmp.lt.s32.totalorder %s19, 1
        %s1292 = scalar_select %p1291, %s19, 1
        %p1293 = scmp.lt.s32.totalorder %s1290, 7
        %s1294 = scalar_select %p1293, %s1290, 7
        %s1295 = smul.addr %s1292, 8
        %s1296 = sadd.s32 %s1294, %s1295
        %s1297 = smul.addr %s1296, 4
        %s1298 = scalar_lea.vmem %s2, %s1297
      $region44: #{blstm2_forward.3} parent=39 // pred_fallthru
        _
    $region40: #{blstm2_forward.3} parent=5 // pred_fallthru
      _
  $region6: #{blstm2_forward.3} parent=0 // loop_footer
    %s12 = sadd.s32 1, %s8
  $region7: #{blstm2_forward.3} parent=0 // loop_footer_branch
    %7 = sbr.rel target = $region3
  $region8: #{blstm2_forward.3} parent=0 // loop_exit
    _

</llo_original>
